<compile_context>
chip_gen: v7x
topology: tpu7x:2x2x1
jax: 0.10.0
libtpu: 0.0.40
codegen_flags: <defaults>
</compile_context>

<pallas_src>
import functools

import jax
import jax.numpy as jnp
from jax.experimental import pallas as pl
from jax.experimental.pallas import tpu as pltpu


def _multi_atrous_kernel(x_ref, wd_ref, bd_ref, wg_ref, bg_ref, col_ref, o_ref,
                         p_scratch, *, H, W, c_in, c_out, dilations, pad_top):
    """One batch element: 3 dilated 3x3 convs + GAP branch, concat on channels."""
    HW = H * W
    x = x_ref[0, :, :]            # (c_in, L) f32  -- read once, reused by all branches
    col = col_ref[...]            # (1, HW) int32  -- output column index (w position)

    # ---- dilated 3x3 conv branches: im2col into VMEM scratch, one MXU matmul each
    for i, d in enumerate(dilations):
        # W-direction zero padding handled by masking (hoisted out of the tap loop).
        mask_l = (col >= d).astype(jnp.float32)         # kw == 0 taps: valid columns
        mask_r = (col < (W - d)).astype(jnp.float32)    # kw == 2 taps: valid columns
        for kh in range(3):
            for kw in range(3):
                # Flat-index shift of this tap relative to the output position.
                shift = (pad_top + (kh - 1) * d) * W + (kw - 1) * d
                patch = x[:, shift:shift + HW]          # (c_in, HW) flat lane slice
                if kw == 0:
                    patch = patch * mask_l
                elif kw == 2:
                    patch = patch * mask_r
                t = kh * 3 + kw
                p_scratch[t * c_in:(t + 1) * c_in, :] = patch
        w_b = wd_ref[i, :, :].astype(jnp.bfloat16)      # (c_out, 9*c_in)
        p_b = p_scratch[...].astype(jnp.bfloat16)       # (9*c_in, HW)
        acc = jnp.dot(w_b, p_b, preferred_element_type=jnp.float32)   # (c_out, HW)
        o_ref[0, i * c_out:(i + 1) * c_out, :] = (
            acc + bd_ref[i, :, :]).astype(o_ref.dtype)

    # ---- GAP branch: AdaptiveAvgPool(1) -> 1x1 conv -> ReLU -> bilinear upsample.
    # The 1x1 conv commutes with the spatial mean, the zero padding does not change
    # the sum, and bilinear upsampling of a 1x1 map is exactly a broadcast.
    y_gap = jnp.dot(wg_ref[...], x, preferred_element_type=jnp.float32)   # (c_out, L)
    g = jnp.sum(y_gap, axis=1, keepdims=True) * (1.0 / HW) + bg_ref[...]  # (c_out, 1)
    g = jnp.maximum(g, 0.0)
    n_d = len(dilations)
    o_ref[0, n_d * c_out:(n_d + 1) * c_out, :] = jnp.broadcast_to(
        g, (c_out, HW)).astype(o_ref.dtype)


def multi_atrous_forward(x_nchw, params, dilation_rates=(3, 6, 9)):
    N, c_in, H, W = x_nchw.shape
    n_d = len(dilation_rates)
    c_out = params["gap_w"].shape[0]
    C_total = (n_d + 1) * c_out
    HW = H * W
    d_max = max(dilation_rates)

    # Pad once in H (shared by all dilations); flatten spatial onto the lane axis.
    # The halo is d_max plus slack so every tap's flat window [shift, shift+H*W)
    # stays inside the array.
    halo = d_max + (-(-d_max // W))
    L = (H + 2 * halo) * W
    xflat = jnp.pad(x_nchw, ((0, 0), (0, 0), (halo, halo), (0, 0))
                    ).reshape(N, c_in, L)

    # Kernel-layout weights: (n_d, c_out, 9*c_in), columns ordered (kh, kw, ci)
    # to match the im2col row order; biases as (c_out, 1) columns.
    wd = jnp.stack([
        jnp.transpose(params[f"dconv{i}_w"], (0, 2, 3, 1)).reshape(c_out, 9 * c_in)
        for i in range(n_d)])
    bd = jnp.stack([params[f"dconv{i}_b"].reshape(c_out, 1) for i in range(n_d)])
    wg = params["gap_w"]                          # (c_out, c_in)
    bg = params["gap_b"].reshape(c_out, 1)
    col_idx = jnp.tile(jnp.arange(W, dtype=jnp.int32), H).reshape(1, HW)

    kern = functools.partial(
        _multi_atrous_kernel, H=H, W=W, c_in=c_in, c_out=c_out,
        dilations=tuple(dilation_rates), pad_top=halo)

    out_flat = pl.pallas_call(
        kern,
        out_shape=jax.ShapeDtypeStruct((N, C_total, HW), x_nchw.dtype),
        grid_spec=pltpu.PrefetchScalarGridSpec(
            num_scalar_prefetch=0,
            grid=(N,),
            in_specs=[
                pl.BlockSpec((1, c_in, L), lambda n: (n, 0, 0)),
                pl.BlockSpec((n_d, c_out, 9 * c_in), lambda n: (0, 0, 0)),
                pl.BlockSpec((n_d, c_out, 1), lambda n: (0, 0, 0)),
                pl.BlockSpec((c_out, c_in), lambda n: (0, 0)),
                pl.BlockSpec((c_out, 1), lambda n: (0, 0)),
                pl.BlockSpec((1, HW), lambda n: (0, 0)),
            ],
            out_specs=pl.BlockSpec((1, C_total, HW), lambda n: (n, 0, 0)),
            scratch_shapes=[pltpu.VMEM((9 * c_in, HW), jnp.float32)],
        ),
        compiler_params=pltpu.CompilerParams(
            dimension_semantics=("parallel",)),
    )(xflat, wd, bd, wg, bg, col_idx)

    # Lane-dense NCHW result: reshaping (N, C, H*W) -> (N, C, H, W) is free.
    return out_flat.reshape(N, C_total, H, W)


def init_params(key, in_channel, out_channel, dilation_rates=(3, 6, 9)):
    c_mid = out_channel // 4
    n_d = len(dilation_rates)
    keys = jax.random.split(key, 2 * n_d + 2)
    params = {}
    for i in range(n_d):
        # PyTorch OIHW layout for the 3x3 dilated convs.
        params[f"dconv{i}_w"] = 0.1 * jax.random.normal(
            keys[2 * i], (c_mid, in_channel, 3, 3), jnp.float32)
        params[f"dconv{i}_b"] = 0.1 * jax.random.normal(
            keys[2 * i + 1], (c_mid,), jnp.float32)
    # 1x1 conv of the GAP branch == dense (c_mid, in_channel) matmul.
    params["gap_w"] = 0.1 * jax.random.normal(
        keys[-2], (c_mid, in_channel), jnp.float32)
    params["gap_b"] = 0.1 * jax.random.normal(keys[-1], (c_mid,), jnp.float32)
    return params


# Pure-JAX reference (NCHW throughout) for correctness checking.
def ref_forward(x_nchw, params, dilation_rates=(3, 6, 9)):
    N, _, H, W = x_nchw.shape
    feats = []
    for i, d in enumerate(dilation_rates):
        y = jax.lax.conv_general_dilated(
            x_nchw, params[f"dconv{i}_w"], window_strides=(1, 1),
            padding=((d, d), (d, d)), rhs_dilation=(d, d),
            dimension_numbers=("NCHW", "OIHW", "NCHW"),
            precision=jax.lax.Precision.HIGHEST)
        feats.append(y + params[f"dconv{i}_b"][None, :, None, None])
    mean = jnp.mean(x_nchw, axis=(2, 3))                               # (N, c_in)
    g = jnp.dot(mean, params["gap_w"].T,
                precision=jax.lax.Precision.HIGHEST) + params["gap_b"]
    g = jnp.maximum(g, 0.0)
    feats.append(jnp.broadcast_to(g[:, :, None, None], (N, g.shape[1], H, W)))
    return jnp.concatenate(feats, axis=1)


if __name__ == "__main__":
    # MultiAtrous(in_channel=4, out_channel=16, size=16), x: (N=2, C=4, H=W=16)
    in_channel, out_channel, size, batch = 4, 16, 16, 2

    key = jax.random.PRNGKey(0)
    k_x, k_p = jax.random.split(key)
    x = jax.random.normal(k_x, (batch, in_channel, size, size), jnp.float32)
    params = init_params(k_p, in_channel, out_channel)

    out = jax.block_until_ready(multi_atrous_forward(x, params))
    assert out.shape == (batch, out_channel, size, size), out.shape

    ref = jax.block_until_ready(ref_forward(x, params))
    assert jnp.allclose(out, ref, rtol=2e-2, atol=2e-2), (
        float(jnp.max(jnp.abs(out - ref))))

    print("KERNEL_OK")
</pallas_src>

<mosaic_0001>
module attributes {stable_mosaic.version = 11 : i64} {
  func.func @_multi_atrous_kernel(%arg0: i32, %arg1: memref<1x4x576xf32, #tpu.memory_space<vmem>>, %arg2: memref<3x4x36xf32, #tpu.memory_space<vmem>>, %arg3: memref<3x4x1xf32, #tpu.memory_space<vmem>>, %arg4: memref<4x4xf32, #tpu.memory_space<vmem>>, %arg5: memref<4x1xf32, #tpu.memory_space<vmem>>, %arg6: memref<1x256xi32, #tpu.memory_space<vmem>>, %arg7: memref<1x16x256xf32, #tpu.memory_space<vmem>>, %arg8: memref<36x256xf32, #tpu.memory_space<vmem>>) attributes {dimension_semantics = [#tpu.dimension_semantics<parallel>], iteration_bounds = array<i64: 2>, scalar_prefetch = 0 : i64, scratch_operands = 1 : i64, tpu.core_type = #tpu.core_type<tc>, window_params = [{transform_indices = @transform_0, window_bounds = array<i64: 1, 4, 576>}, {pipeline_mode = #tpu.pipeline_mode<synchronous>, transform_indices = @transform_1, window_bounds = array<i64: 3, 4, 36>}, {pipeline_mode = #tpu.pipeline_mode<synchronous>, transform_indices = @transform_2, window_bounds = array<i64: 3, 4, 1>}, {pipeline_mode = #tpu.pipeline_mode<synchronous>, transform_indices = @transform_3, window_bounds = array<i64: 4, 4>}, {pipeline_mode = #tpu.pipeline_mode<synchronous>, transform_indices = @transform_4, window_bounds = array<i64: 4, 1>}, {pipeline_mode = #tpu.pipeline_mode<synchronous>, transform_indices = @transform_5, window_bounds = array<i64: 1, 256>}, {transform_indices = @transform_6, window_bounds = array<i64: 1, 16, 256>}]} {
    %c0 = arith.constant 0 : index
    %c0_0 = arith.constant 0 : index
    %c0_1 = arith.constant 0 : index
    %0 = vector.load %arg1[%c0, %c0_0, %c0_1] : memref<1x4x576xf32, #tpu.memory_space<vmem>>, vector<1x4x576xf32>
    %1 = vector.shape_cast %0 : vector<1x4x576xf32> to vector<4x576xf32>
    %c0_2 = arith.constant 0 : index
    %c0_3 = arith.constant 0 : index
    %2 = vector.load %arg6[%c0_2, %c0_3] : memref<1x256xi32, #tpu.memory_space<vmem>>, vector<1x256xi32>
    %c3_i32 = arith.constant 3 : i32
    %3 = vector.broadcast %c3_i32 : i32 to vector<1x256xi32>
    %4 = arith.cmpi sge, %2, %3 : vector<1x256xi32>
    %5 = arith.extui %4 : vector<1x256xi1> to vector<1x256xi32>
    %6 = arith.sitofp %5 : vector<1x256xi32> to vector<1x256xf32>
    %c13_i32 = arith.constant 13 : i32
    %7 = vector.broadcast %c13_i32 : i32 to vector<1x256xi32>
    %8 = arith.cmpi slt, %2, %7 : vector<1x256xi32>
    %9 = arith.extui %8 : vector<1x256xi1> to vector<1x256xi32>
    %10 = arith.sitofp %9 : vector<1x256xi32> to vector<1x256xf32>
    %11 = vector.extract_strided_slice %1 {offsets = [0, 109], sizes = [4, 256], strides = [1, 1]} : vector<4x576xf32> to vector<4x256xf32>
    %12 = vector.broadcast %6 : vector<1x256xf32> to vector<4x256xf32>
    %13 = arith.mulf %11, %12 : vector<4x256xf32>
    %c0_4 = arith.constant 0 : index
    %c0_5 = arith.constant 0 : index
    %14 = vector.load %arg8[%c0_4, %c0_5] : memref<36x256xf32, #tpu.memory_space<vmem>>, vector<4x256xf32>
    tpu.vector_store %arg8[%c0_4, %c0_5], %13 {strides = array<i32>} : memref<36x256xf32, #tpu.memory_space<vmem>>, vector<4x256xf32>,
    %15 = vector.extract_strided_slice %1 {offsets = [0, 112], sizes = [4, 256], strides = [1, 1]} : vector<4x576xf32> to vector<4x256xf32>
    %c4 = arith.constant 4 : index
    %c0_6 = arith.constant 0 : index
    %16 = vector.load %arg8[%c4, %c0_6] : memref<36x256xf32, #tpu.memory_space<vmem>>, vector<4x256xf32>
    tpu.vector_store %arg8[%c4, %c0_6], %15 {strides = array<i32>} : memref<36x256xf32, #tpu.memory_space<vmem>>, vector<4x256xf32>,
    %17 = vector.extract_strided_slice %1 {offsets = [0, 115], sizes = [4, 256], strides = [1, 1]} : vector<4x576xf32> to vector<4x256xf32>
    %18 = vector.broadcast %10 : vector<1x256xf32> to vector<4x256xf32>
    %19 = arith.mulf %17, %18 : vector<4x256xf32>
    %c8 = arith.constant 8 : index
    %c0_7 = arith.constant 0 : index
    %20 = vector.load %arg8[%c8, %c0_7] : memref<36x256xf32, #tpu.memory_space<vmem>>, vector<4x256xf32>
    tpu.vector_store %arg8[%c8, %c0_7], %19 {strides = array<i32>} : memref<36x256xf32, #tpu.memory_space<vmem>>, vector<4x256xf32>,
    %21 = vector.extract_strided_slice %1 {offsets = [0, 157], sizes = [4, 256], strides = [1, 1]} : vector<4x576xf32> to vector<4x256xf32>
    %22 = vector.broadcast %6 : vector<1x256xf32> to vector<4x256xf32>
    %23 = arith.mulf %21, %22 : vector<4x256xf32>
    %c12 = arith.constant 12 : index
    %c0_8 = arith.constant 0 : index
    %24 = vector.load %arg8[%c12, %c0_8] : memref<36x256xf32, #tpu.memory_space<vmem>>, vector<4x256xf32>
    tpu.vector_store %arg8[%c12, %c0_8], %23 {strides = array<i32>} : memref<36x256xf32, #tpu.memory_space<vmem>>, vector<4x256xf32>,
    %25 = vector.extract_strided_slice %1 {offsets = [0, 160], sizes = [4, 256], strides = [1, 1]} : vector<4x576xf32> to vector<4x256xf32>
    %c16 = arith.constant 16 : index
    %c0_9 = arith.constant 0 : index
    %26 = vector.load %arg8[%c16, %c0_9] : memref<36x256xf32, #tpu.memory_space<vmem>>, vector<4x256xf32>
    tpu.vector_store %arg8[%c16, %c0_9], %25 {strides = array<i32>} : memref<36x256xf32, #tpu.memory_space<vmem>>, vector<4x256xf32>,
    %27 = vector.extract_strided_slice %1 {offsets = [0, 163], sizes = [4, 256], strides = [1, 1]} : vector<4x576xf32> to vector<4x256xf32>
    %28 = vector.broadcast %10 : vector<1x256xf32> to vector<4x256xf32>
    %29 = arith.mulf %27, %28 : vector<4x256xf32>
    %c20 = arith.constant 20 : index
    %c0_10 = arith.constant 0 : index
    %30 = vector.load %arg8[%c20, %c0_10] : memref<36x256xf32, #tpu.memory_space<vmem>>, vector<4x256xf32>
    tpu.vector_store %arg8[%c20, %c0_10], %29 {strides = array<i32>} : memref<36x256xf32, #tpu.memory_space<vmem>>, vector<4x256xf32>,
    %31 = vector.extract_strided_slice %1 {offsets = [0, 205], sizes = [4, 256], strides = [1, 1]} : vector<4x576xf32> to vector<4x256xf32>
    %32 = vector.broadcast %6 : vector<1x256xf32> to vector<4x256xf32>
    %33 = arith.mulf %31, %32 : vector<4x256xf32>
    %c24 = arith.constant 24 : index
    %c0_11 = arith.constant 0 : index
    %34 = vector.load %arg8[%c24, %c0_11] : memref<36x256xf32, #tpu.memory_space<vmem>>, vector<4x256xf32>
    tpu.vector_store %arg8[%c24, %c0_11], %33 {strides = array<i32>} : memref<36x256xf32, #tpu.memory_space<vmem>>, vector<4x256xf32>,
    %35 = vector.extract_strided_slice %1 {offsets = [0, 208], sizes = [4, 256], strides = [1, 1]} : vector<4x576xf32> to vector<4x256xf32>
    %c28 = arith.constant 28 : index
    %c0_12 = arith.constant 0 : index
    %36 = vector.load %arg8[%c28, %c0_12] : memref<36x256xf32, #tpu.memory_space<vmem>>, vector<4x256xf32>
    tpu.vector_store %arg8[%c28, %c0_12], %35 {strides = array<i32>} : memref<36x256xf32, #tpu.memory_space<vmem>>, vector<4x256xf32>,
    %37 = vector.extract_strided_slice %1 {offsets = [0, 211], sizes = [4, 256], strides = [1, 1]} : vector<4x576xf32> to vector<4x256xf32>
    %38 = vector.broadcast %10 : vector<1x256xf32> to vector<4x256xf32>
    %39 = arith.mulf %37, %38 : vector<4x256xf32>
    %c32 = arith.constant 32 : index
    %c0_13 = arith.constant 0 : index
    %40 = vector.load %arg8[%c32, %c0_13] : memref<36x256xf32, #tpu.memory_space<vmem>>, vector<4x256xf32>
    tpu.vector_store %arg8[%c32, %c0_13], %39 {strides = array<i32>} : memref<36x256xf32, #tpu.memory_space<vmem>>, vector<4x256xf32>,
    %c0_14 = arith.constant 0 : index
    %c0_15 = arith.constant 0 : index
    %c0_16 = arith.constant 0 : index
    %41 = vector.load %arg2[%c0_14, %c0_15, %c0_16] : memref<3x4x36xf32, #tpu.memory_space<vmem>>, vector<1x4x36xf32>
    %42 = vector.shape_cast %41 : vector<1x4x36xf32> to vector<4x36xf32>
    %43 = arith.truncf %42 : vector<4x36xf32> to vector<4x36xbf16>
    %c0_17 = arith.constant 0 : index
    %c0_18 = arith.constant 0 : index
    %44 = vector.load %arg8[%c0_17, %c0_18] : memref<36x256xf32, #tpu.memory_space<vmem>>, vector<36x256xf32>
    %45 = arith.truncf %44 : vector<36x256xf32> to vector<36x256xbf16>
    %cst = arith.constant dense<0.000000e+00> : vector<4x256xf32>
    %46 = tpu.matmul %43, %45, %cst {dimension_numbers = #tpu.dot_dimension_numbers<[1], [0], [0], [1], [0, 0, 1, 1], [], []>} : vector<4x36xbf16>, vector<36x256xbf16>, vector<4x256xf32> -> vector<4x256xf32>
    %c0_19 = arith.constant 0 : index
    %c0_20 = arith.constant 0 : index
    %c0_21 = arith.constant 0 : index
    %47 = vector.load %arg3[%c0_19, %c0_20, %c0_21] : memref<3x4x1xf32, #tpu.memory_space<vmem>>, vector<1x4x1xf32>
    %48 = vector.shape_cast %47 : vector<1x4x1xf32> to vector<4x1xf32>
    %49 = vector.broadcast %48 : vector<4x1xf32> to vector<4x256xf32>
    %50 = arith.addf %46, %49 : vector<4x256xf32>
    %c0_22 = arith.constant 0 : index
    %c0_23 = arith.constant 0 : index
    %c0_24 = arith.constant 0 : index
    %51 = vector.load %arg7[%c0_22, %c0_23, %c0_24] : memref<1x16x256xf32, #tpu.memory_space<vmem>>, vector<1x4x256xf32>
    %52 = vector.shape_cast %51 : vector<1x4x256xf32> to vector<4x256xf32>
    %53 = vector.shape_cast %50 : vector<4x256xf32> to vector<1x4x256xf32>
    tpu.vector_store %arg7[%c0_22, %c0_23, %c0_24], %53 {strides = array<i32>} : memref<1x16x256xf32, #tpu.memory_space<vmem>>, vector<1x4x256xf32>,
    %c6_i32 = arith.constant 6 : i32
    %54 = vector.broadcast %c6_i32 : i32 to vector<1x256xi32>
    %55 = arith.cmpi sge, %2, %54 : vector<1x256xi32>
    %56 = arith.extui %55 : vector<1x256xi1> to vector<1x256xi32>
    %57 = arith.sitofp %56 : vector<1x256xi32> to vector<1x256xf32>
    %c10_i32 = arith.constant 10 : i32
    %58 = vector.broadcast %c10_i32 : i32 to vector<1x256xi32>
    %59 = arith.cmpi slt, %2, %58 : vector<1x256xi32>
    %60 = arith.extui %59 : vector<1x256xi1> to vector<1x256xi32>
    %61 = arith.sitofp %60 : vector<1x256xi32> to vector<1x256xf32>
    %62 = vector.extract_strided_slice %1 {offsets = [0, 58], sizes = [4, 256], strides = [1, 1]} : vector<4x576xf32> to vector<4x256xf32>
    %63 = vector.broadcast %57 : vector<1x256xf32> to vector<4x256xf32>
    %64 = arith.mulf %62, %63 : vector<4x256xf32>
    %c0_25 = arith.constant 0 : index
    %c0_26 = arith.constant 0 : index
    %65 = vector.load %arg8[%c0_25, %c0_26] : memref<36x256xf32, #tpu.memory_space<vmem>>, vector<4x256xf32>
    tpu.vector_store %arg8[%c0_25, %c0_26], %64 {strides = array<i32>} : memref<36x256xf32, #tpu.memory_space<vmem>>, vector<4x256xf32>,
    %66 = vector.extract_strided_slice %1 {offsets = [0, 64], sizes = [4, 256], strides = [1, 1]} : vector<4x576xf32> to vector<4x256xf32>
    %c4_27 = arith.constant 4 : index
    %c0_28 = arith.constant 0 : index
    %67 = vector.load %arg8[%c4_27, %c0_28] : memref<36x256xf32, #tpu.memory_space<vmem>>, vector<4x256xf32>
    tpu.vector_store %arg8[%c4_27, %c0_28], %66 {strides = array<i32>} : memref<36x256xf32, #tpu.memory_space<vmem>>, vector<4x256xf32>,
    %68 = vector.extract_strided_slice %1 {offsets = [0, 70], sizes = [4, 256], strides = [1, 1]} : vector<4x576xf32> to vector<4x256xf32>
    %69 = vector.broadcast %61 : vector<1x256xf32> to vector<4x256xf32>
    %70 = arith.mulf %68, %69 : vector<4x256xf32>
    %c8_29 = arith.constant 8 : index
    %c0_30 = arith.constant 0 : index
    %71 = vector.load %arg8[%c8_29, %c0_30] : memref<36x256xf32, #tpu.memory_space<vmem>>, vector<4x256xf32>
    tpu.vector_store %arg8[%c8_29, %c0_30], %70 {strides = array<i32>} : memref<36x256xf32, #tpu.memory_space<vmem>>, vector<4x256xf32>,
    %72 = vector.extract_strided_slice %1 {offsets = [0, 154], sizes = [4, 256], strides = [1, 1]} : vector<4x576xf32> to vector<4x256xf32>
    %73 = vector.broadcast %57 : vector<1x256xf32> to vector<4x256xf32>
    %74 = arith.mulf %72, %73 : vector<4x256xf32>
    %c12_31 = arith.constant 12 : index
    %c0_32 = arith.constant 0 : index
    %75 = vector.load %arg8[%c12_31, %c0_32] : memref<36x256xf32, #tpu.memory_space<vmem>>, vector<4x256xf32>
    tpu.vector_store %arg8[%c12_31, %c0_32], %74 {strides = array<i32>} : memref<36x256xf32, #tpu.memory_space<vmem>>, vector<4x256xf32>,
    %76 = vector.extract_strided_slice %1 {offsets = [0, 160], sizes = [4, 256], strides = [1, 1]} : vector<4x576xf32> to vector<4x256xf32>
    %c16_33 = arith.constant 16 : index
    %c0_34 = arith.constant 0 : index
    %77 = vector.load %arg8[%c16_33, %c0_34] : memref<36x256xf32, #tpu.memory_space<vmem>>, vector<4x256xf32>
    tpu.vector_store %arg8[%c16_33, %c0_34], %76 {strides = array<i32>} : memref<36x256xf32, #tpu.memory_space<vmem>>, vector<4x256xf32>,
    %78 = vector.extract_strided_slice %1 {offsets = [0, 166], sizes = [4, 256], strides = [1, 1]} : vector<4x576xf32> to vector<4x256xf32>
    %79 = vector.broadcast %61 : vector<1x256xf32> to vector<4x256xf32>
    %80 = arith.mulf %78, %79 : vector<4x256xf32>
    %c20_35 = arith.constant 20 : index
    %c0_36 = arith.constant 0 : index
    %81 = vector.load %arg8[%c20_35, %c0_36] : memref<36x256xf32, #tpu.memory_space<vmem>>, vector<4x256xf32>
    tpu.vector_store %arg8[%c20_35, %c0_36], %80 {strides = array<i32>} : memref<36x256xf32, #tpu.memory_space<vmem>>, vector<4x256xf32>,
    %82 = vector.extract_strided_slice %1 {offsets = [0, 250], sizes = [4, 256], strides = [1, 1]} : vector<4x576xf32> to vector<4x256xf32>
    %83 = vector.broadcast %57 : vector<1x256xf32> to vector<4x256xf32>
    %84 = arith.mulf %82, %83 : vector<4x256xf32>
    %c24_37 = arith.constant 24 : index
    %c0_38 = arith.constant 0 : index
    %85 = vector.load %arg8[%c24_37, %c0_38] : memref<36x256xf32, #tpu.memory_space<vmem>>, vector<4x256xf32>
    tpu.vector_store %arg8[%c24_37, %c0_38], %84 {strides = array<i32>} : memref<36x256xf32, #tpu.memory_space<vmem>>, vector<4x256xf32>,
    %86 = vector.extract_strided_slice %1 {offsets = [0, 256], sizes = [4, 256], strides = [1, 1]} : vector<4x576xf32> to vector<4x256xf32>
    %c28_39 = arith.constant 28 : index
    %c0_40 = arith.constant 0 : index
    %87 = vector.load %arg8[%c28_39, %c0_40] : memref<36x256xf32, #tpu.memory_space<vmem>>, vector<4x256xf32>
    tpu.vector_store %arg8[%c28_39, %c0_40], %86 {strides = array<i32>} : memref<36x256xf32, #tpu.memory_space<vmem>>, vector<4x256xf32>,
    %88 = vector.extract_strided_slice %1 {offsets = [0, 262], sizes = [4, 256], strides = [1, 1]} : vector<4x576xf32> to vector<4x256xf32>
    %89 = vector.broadcast %61 : vector<1x256xf32> to vector<4x256xf32>
    %90 = arith.mulf %88, %89 : vector<4x256xf32>
    %c32_41 = arith.constant 32 : index
    %c0_42 = arith.constant 0 : index
    %91 = vector.load %arg8[%c32_41, %c0_42] : memref<36x256xf32, #tpu.memory_space<vmem>>, vector<4x256xf32>
    tpu.vector_store %arg8[%c32_41, %c0_42], %90 {strides = array<i32>} : memref<36x256xf32, #tpu.memory_space<vmem>>, vector<4x256xf32>,
    %c1 = arith.constant 1 : index
    %c0_43 = arith.constant 0 : index
    %c0_44 = arith.constant 0 : index
    %92 = vector.load %arg2[%c1, %c0_43, %c0_44] : memref<3x4x36xf32, #tpu.memory_space<vmem>>, vector<1x4x36xf32>
    %93 = vector.shape_cast %92 : vector<1x4x36xf32> to vector<4x36xf32>
    %94 = arith.truncf %93 : vector<4x36xf32> to vector<4x36xbf16>
    %c0_45 = arith.constant 0 : index
    %c0_46 = arith.constant 0 : index
    %95 = vector.load %arg8[%c0_45, %c0_46] : memref<36x256xf32, #tpu.memory_space<vmem>>, vector<36x256xf32>
    %96 = arith.truncf %95 : vector<36x256xf32> to vector<36x256xbf16>
    %cst_47 = arith.constant dense<0.000000e+00> : vector<4x256xf32>
    %97 = tpu.matmul %94, %96, %cst_47 {dimension_numbers = #tpu.dot_dimension_numbers<[1], [0], [0], [1], [0, 0, 1, 1], [], []>} : vector<4x36xbf16>, vector<36x256xbf16>, vector<4x256xf32> -> vector<4x256xf32>
    %c1_48 = arith.constant 1 : index
    %c0_49 = arith.constant 0 : index
    %c0_50 = arith.constant 0 : index
    %98 = vector.load %arg3[%c1_48, %c0_49, %c0_50] : memref<3x4x1xf32, #tpu.memory_space<vmem>>, vector<1x4x1xf32>
    %99 = vector.shape_cast %98 : vector<1x4x1xf32> to vector<4x1xf32>
    %100 = vector.broadcast %99 : vector<4x1xf32> to vector<4x256xf32>
    %101 = arith.addf %97, %100 : vector<4x256xf32>
    %c0_51 = arith.constant 0 : index
    %c4_52 = arith.constant 4 : index
    %c0_53 = arith.constant 0 : index
    %102 = vector.load %arg7[%c0_51, %c4_52, %c0_53] : memref<1x16x256xf32, #tpu.memory_space<vmem>>, vector<1x4x256xf32>
    %103 = vector.shape_cast %102 : vector<1x4x256xf32> to vector<4x256xf32>
    %104 = vector.shape_cast %101 : vector<4x256xf32> to vector<1x4x256xf32>
    tpu.vector_store %arg7[%c0_51, %c4_52, %c0_53], %104 {strides = array<i32>} : memref<1x16x256xf32, #tpu.memory_space<vmem>>, vector<1x4x256xf32>,
    %c9_i32 = arith.constant 9 : i32
    %105 = vector.broadcast %c9_i32 : i32 to vector<1x256xi32>
    %106 = arith.cmpi sge, %2, %105 : vector<1x256xi32>
    %107 = arith.extui %106 : vector<1x256xi1> to vector<1x256xi32>
    %108 = arith.sitofp %107 : vector<1x256xi32> to vector<1x256xf32>
    %c7_i32 = arith.constant 7 : i32
    %109 = vector.broadcast %c7_i32 : i32 to vector<1x256xi32>
    %110 = arith.cmpi slt, %2, %109 : vector<1x256xi32>
    %111 = arith.extui %110 : vector<1x256xi1> to vector<1x256xi32>
    %112 = arith.sitofp %111 : vector<1x256xi32> to vector<1x256xf32>
    %113 = vector.extract_strided_slice %1 {offsets = [0, 7], sizes = [4, 256], strides = [1, 1]} : vector<4x576xf32> to vector<4x256xf32>
    %114 = vector.broadcast %108 : vector<1x256xf32> to vector<4x256xf32>
    %115 = arith.mulf %113, %114 : vector<4x256xf32>
    %c0_54 = arith.constant 0 : index
    %c0_55 = arith.constant 0 : index
    %116 = vector.load %arg8[%c0_54, %c0_55] : memref<36x256xf32, #tpu.memory_space<vmem>>, vector<4x256xf32>
    tpu.vector_store %arg8[%c0_54, %c0_55], %115 {strides = array<i32>} : memref<36x256xf32, #tpu.memory_space<vmem>>, vector<4x256xf32>,
    %117 = vector.extract_strided_slice %1 {offsets = [0, 16], sizes = [4, 256], strides = [1, 1]} : vector<4x576xf32> to vector<4x256xf32>
    %c4_56 = arith.constant 4 : index
    %c0_57 = arith.constant 0 : index
    %118 = vector.load %arg8[%c4_56, %c0_57] : memref<36x256xf32, #tpu.memory_space<vmem>>, vector<4x256xf32>
    tpu.vector_store %arg8[%c4_56, %c0_57], %117 {strides = array<i32>} : memref<36x256xf32, #tpu.memory_space<vmem>>, vector<4x256xf32>,
    %119 = vector.extract_strided_slice %1 {offsets = [0, 25], sizes = [4, 256], strides = [1, 1]} : vector<4x576xf32> to vector<4x256xf32>
    %120 = vector.broadcast %112 : vector<1x256xf32> to vector<4x256xf32>
    %121 = arith.mulf %119, %120 : vector<4x256xf32>
    %c8_58 = arith.constant 8 : index
    %c0_59 = arith.constant 0 : index
    %122 = vector.load %arg8[%c8_58, %c0_59] : memref<36x256xf32, #tpu.memory_space<vmem>>, vector<4x256xf32>
    tpu.vector_store %arg8[%c8_58, %c0_59], %121 {strides = array<i32>} : memref<36x256xf32, #tpu.memory_space<vmem>>, vector<4x256xf32>,
    %123 = vector.extract_strided_slice %1 {offsets = [0, 151], sizes = [4, 256], strides = [1, 1]} : vector<4x576xf32> to vector<4x256xf32>
    %124 = vector.broadcast %108 : vector<1x256xf32> to vector<4x256xf32>
    %125 = arith.mulf %123, %124 : vector<4x256xf32>
    %c12_60 = arith.constant 12 : index
    %c0_61 = arith.constant 0 : index
    %126 = vector.load %arg8[%c12_60, %c0_61] : memref<36x256xf32, #tpu.memory_space<vmem>>, vector<4x256xf32>
    tpu.vector_store %arg8[%c12_60, %c0_61], %125 {strides = array<i32>} : memref<36x256xf32, #tpu.memory_space<vmem>>, vector<4x256xf32>,
    %127 = vector.extract_strided_slice %1 {offsets = [0, 160], sizes = [4, 256], strides = [1, 1]} : vector<4x576xf32> to vector<4x256xf32>
    %c16_62 = arith.constant 16 : index
    %c0_63 = arith.constant 0 : index
    %128 = vector.load %arg8[%c16_62, %c0_63] : memref<36x256xf32, #tpu.memory_space<vmem>>, vector<4x256xf32>
    tpu.vector_store %arg8[%c16_62, %c0_63], %127 {strides = array<i32>} : memref<36x256xf32, #tpu.memory_space<vmem>>, vector<4x256xf32>,
    %129 = vector.extract_strided_slice %1 {offsets = [0, 169], sizes = [4, 256], strides = [1, 1]} : vector<4x576xf32> to vector<4x256xf32>
    %130 = vector.broadcast %112 : vector<1x256xf32> to vector<4x256xf32>
    %131 = arith.mulf %129, %130 : vector<4x256xf32>
    %c20_64 = arith.constant 20 : index
    %c0_65 = arith.constant 0 : index
    %132 = vector.load %arg8[%c20_64, %c0_65] : memref<36x256xf32, #tpu.memory_space<vmem>>, vector<4x256xf32>
    tpu.vector_store %arg8[%c20_64, %c0_65], %131 {strides = array<i32>} : memref<36x256xf32, #tpu.memory_space<vmem>>, vector<4x256xf32>,
    %133 = vector.extract_strided_slice %1 {offsets = [0, 295], sizes = [4, 256], strides = [1, 1]} : vector<4x576xf32> to vector<4x256xf32>
    %134 = vector.broadcast %108 : vector<1x256xf32> to vector<4x256xf32>
    %135 = arith.mulf %133, %134 : vector<4x256xf32>
    %c24_66 = arith.constant 24 : index
    %c0_67 = arith.constant 0 : index
    %136 = vector.load %arg8[%c24_66, %c0_67] : memref<36x256xf32, #tpu.memory_space<vmem>>, vector<4x256xf32>
    tpu.vector_store %arg8[%c24_66, %c0_67], %135 {strides = array<i32>} : memref<36x256xf32, #tpu.memory_space<vmem>>, vector<4x256xf32>,
    %137 = vector.extract_strided_slice %1 {offsets = [0, 304], sizes = [4, 256], strides = [1, 1]} : vector<4x576xf32> to vector<4x256xf32>
    %c28_68 = arith.constant 28 : index
    %c0_69 = arith.constant 0 : index
    %138 = vector.load %arg8[%c28_68, %c0_69] : memref<36x256xf32, #tpu.memory_space<vmem>>, vector<4x256xf32>
    tpu.vector_store %arg8[%c28_68, %c0_69], %137 {strides = array<i32>} : memref<36x256xf32, #tpu.memory_space<vmem>>, vector<4x256xf32>,
    %139 = vector.extract_strided_slice %1 {offsets = [0, 313], sizes = [4, 256], strides = [1, 1]} : vector<4x576xf32> to vector<4x256xf32>
    %140 = vector.broadcast %112 : vector<1x256xf32> to vector<4x256xf32>
    %141 = arith.mulf %139, %140 : vector<4x256xf32>
    %c32_70 = arith.constant 32 : index
    %c0_71 = arith.constant 0 : index
    %142 = vector.load %arg8[%c32_70, %c0_71] : memref<36x256xf32, #tpu.memory_space<vmem>>, vector<4x256xf32>
    tpu.vector_store %arg8[%c32_70, %c0_71], %141 {strides = array<i32>} : memref<36x256xf32, #tpu.memory_space<vmem>>, vector<4x256xf32>,
    %c2 = arith.constant 2 : index
    %c0_72 = arith.constant 0 : index
    %c0_73 = arith.constant 0 : index
    %143 = vector.load %arg2[%c2, %c0_72, %c0_73] : memref<3x4x36xf32, #tpu.memory_space<vmem>>, vector<1x4x36xf32>
    %144 = vector.shape_cast %143 : vector<1x4x36xf32> to vector<4x36xf32>
    %145 = arith.truncf %144 : vector<4x36xf32> to vector<4x36xbf16>
    %c0_74 = arith.constant 0 : index
    %c0_75 = arith.constant 0 : index
    %146 = vector.load %arg8[%c0_74, %c0_75] : memref<36x256xf32, #tpu.memory_space<vmem>>, vector<36x256xf32>
    %147 = arith.truncf %146 : vector<36x256xf32> to vector<36x256xbf16>
    %cst_76 = arith.constant dense<0.000000e+00> : vector<4x256xf32>
    %148 = tpu.matmul %145, %147, %cst_76 {dimension_numbers = #tpu.dot_dimension_numbers<[1], [0], [0], [1], [0, 0, 1, 1], [], []>} : vector<4x36xbf16>, vector<36x256xbf16>, vector<4x256xf32> -> vector<4x256xf32>
    %c2_77 = arith.constant 2 : index
    %c0_78 = arith.constant 0 : index
    %c0_79 = arith.constant 0 : index
    %149 = vector.load %arg3[%c2_77, %c0_78, %c0_79] : memref<3x4x1xf32, #tpu.memory_space<vmem>>, vector<1x4x1xf32>
    %150 = vector.shape_cast %149 : vector<1x4x1xf32> to vector<4x1xf32>
    %151 = vector.broadcast %150 : vector<4x1xf32> to vector<4x256xf32>
    %152 = arith.addf %148, %151 : vector<4x256xf32>
    %c0_80 = arith.constant 0 : index
    %c8_81 = arith.constant 8 : index
    %c0_82 = arith.constant 0 : index
    %153 = vector.load %arg7[%c0_80, %c8_81, %c0_82] : memref<1x16x256xf32, #tpu.memory_space<vmem>>, vector<1x4x256xf32>
    %154 = vector.shape_cast %153 : vector<1x4x256xf32> to vector<4x256xf32>
    %155 = vector.shape_cast %152 : vector<4x256xf32> to vector<1x4x256xf32>
    tpu.vector_store %arg7[%c0_80, %c8_81, %c0_82], %155 {strides = array<i32>} : memref<1x16x256xf32, #tpu.memory_space<vmem>>, vector<1x4x256xf32>,
    %c0_83 = arith.constant 0 : index
    %c0_84 = arith.constant 0 : index
    %156 = vector.load %arg4[%c0_83, %c0_84] : memref<4x4xf32, #tpu.memory_space<vmem>>, vector<4x4xf32>
    %cst_85 = arith.constant dense<0.000000e+00> : vector<4x576xf32>
    %157 = tpu.matmul %156, %1, %cst_85 {dimension_numbers = #tpu.dot_dimension_numbers<[1], [0], [0], [1], [0, 0, 1, 1], [], []>} : vector<4x4xf32>, vector<4x576xf32>, vector<4x576xf32> -> vector<4x576xf32>
    %cst_86 = arith.constant dense<0.000000e+00> : vector<4xf32>
    %158 = vector.multi_reduction <add>, %157, %cst_86 [1] : vector<4x576xf32> to vector<4xf32>
    %159 = vector.shape_cast %158 : vector<4xf32> to vector<4x1xf32>
    %cst_87 = arith.constant 3.906250e-03 : f32
    %160 = vector.broadcast %cst_87 : f32 to vector<4x1xf32>
    %161 = arith.mulf %159, %160 : vector<4x1xf32>
    %c0_88 = arith.constant 0 : index
    %c0_89 = arith.constant 0 : index
    %162 = vector.load %arg5[%c0_88, %c0_89] : memref<4x1xf32, #tpu.memory_space<vmem>>, vector<4x1xf32>
    %163 = arith.addf %161, %162 : vector<4x1xf32>
    %cst_90 = arith.constant 0.000000e+00 : f32
    %164 = vector.broadcast %cst_90 : f32 to vector<4x1xf32>
    %165 = arith.maximumf %163, %164 : vector<4x1xf32>
    %166 = vector.shape_cast %165 : vector<4x1xf32> to vector<4x1xf32>
    %167 = vector.broadcast %166 : vector<4x1xf32> to vector<4x256xf32>
    %c0_91 = arith.constant 0 : index
    %c12_92 = arith.constant 12 : index
    %c0_93 = arith.constant 0 : index
    %168 = vector.load %arg7[%c0_91, %c12_92, %c0_93] : memref<1x16x256xf32, #tpu.memory_space<vmem>>, vector<1x4x256xf32>
    %169 = vector.shape_cast %168 : vector<1x4x256xf32> to vector<4x256xf32>
    %170 = vector.shape_cast %167 : vector<4x256xf32> to vector<1x4x256xf32>
    tpu.vector_store %arg7[%c0_91, %c12_92, %c0_93], %170 {strides = array<i32>} : memref<1x16x256xf32, #tpu.memory_space<vmem>>, vector<1x4x256xf32>,
    return
  }
  func.func @transform_0(%arg0: i32) -> (i32, i32, i32) {
    %c0_i32 = arith.constant 0 : i32
    %c0_i32_0 = arith.constant 0 : i32
    %c0_i32_1 = arith.constant 0 : i32
    return %arg0, %c0_i32, %c0_i32_0 : i32, i32, i32
  }
  func.func @transform_1(%arg0: i32) -> (i32, i32, i32) {
    %c0_i32 = arith.constant 0 : i32
    %c0_i32_0 = arith.constant 0 : i32
    %c0_i32_1 = arith.constant 0 : i32
    %c0_i32_2 = arith.constant 0 : i32
    return %c0_i32, %c0_i32_0, %c0_i32_1 : i32, i32, i32
  }
  func.func @transform_2(%arg0: i32) -> (i32, i32, i32) {
    %c0_i32 = arith.constant 0 : i32
    %c0_i32_0 = arith.constant 0 : i32
    %c0_i32_1 = arith.constant 0 : i32
    %c0_i32_2 = arith.constant 0 : i32
    return %c0_i32, %c0_i32_0, %c0_i32_1 : i32, i32, i32
  }
  func.func @transform_3(%arg0: i32) -> (i32, i32) {
    %c0_i32 = arith.constant 0 : i32
    %c0_i32_0 = arith.constant 0 : i32
    %c0_i32_1 = arith.constant 0 : i32
    return %c0_i32, %c0_i32_0 : i32, i32
  }
  func.func @transform_4(%arg0: i32) -> (i32, i32) {
    %c0_i32 = arith.constant 0 : i32
    %c0_i32_0 = arith.constant 0 : i32
    %c0_i32_1 = arith.constant 0 : i32
    return %c0_i32, %c0_i32_0 : i32, i32
  }
  func.func @transform_5(%arg0: i32) -> (i32, i32) {
    %c0_i32 = arith.constant 0 : i32
    %c0_i32_0 = arith.constant 0 : i32
    %c0_i32_1 = arith.constant 0 : i32
    return %c0_i32, %c0_i32_0 : i32, i32
  }
  func.func @transform_6(%arg0: i32) -> (i32, i32, i32) {
    %c0_i32 = arith.constant 0 : i32
    %c0_i32_0 = arith.constant 0 : i32
    %c0_i32_1 = arith.constant 0 : i32
    return %arg0, %c0_i32, %c0_i32_0 : i32, i32, i32
  }
}

</mosaic_0001>

<llo_original>
// kernel: tpu_custom_call.1
$region0: #{tpu_custom_call.1}
  #allocation0 [shape = 'u32[]', space=smem, size = 0x4, offset = 0x4, fixed_abs, tag = 'smem constant byte address 0x4 - core index']
  #allocation1 [shape = 'u32[144,128]{1,0:T(1,128)}', space=vmem, size = 0x12000, scoped, tag = 'internal scratch']
  #allocation2 [shape = 'f32[36,256]{1,0:T(8,128)}', space=vmem, size = 0xa000, scoped, tag = 'scratch operand']
  %s0 = inlined_call_operand.hbm [shape: f32[2,4,576], index: 0, kind: input, shape index: {}]
  %s1 = inlined_call_operand.vmem [shape: f32[3,4,36], index: 1, kind: input, shape index: {}]
  %s2 = inlined_call_operand.vmem [shape: f32[3,4,1], index: 2, kind: input, shape index: {}]
  %s3 = inlined_call_operand.vmem [shape: f32[4,4], index: 3, kind: input, shape index: {}]
  %s4 = inlined_call_operand.vmem [shape: f32[4,1], index: 4, kind: input, shape index: {}]
  %s5 = inlined_call_operand.vmem [shape: s32[1,256], index: 5, kind: input, shape index: {}]
  %s6 = inlined_call_operand.hbm [shape: f32[2,16,256], index: 6, kind: output, shape index: {}]
  %s7 = sld [smem:[#allocation0]]
  $region61: #{tpu_custom_call.1} parent=0
    _
  %s9 = ssub.s32 1, %s7
  %s10 = scalar_select 0, %s9, %s7
  $region1: #{tpu_custom_call.1} parent=0
    #allocation3 [shape = 'u8[20480]{0}', space=vmem, size = 0x5000, scoped, tag = 'input window, operand 0']
    #allocation4 [shape = 's32[2]{0}', space=sflag, size = 0x8, scoped, tag = 'scoped memory for tpu_custom_call.1']
    #allocation5 [shape = 's32[2]{0}', space=sflag, size = 0x8, scoped, tag = 'scoped memory for tpu_custom_call.1']
    #allocation6 [shape = 'u8[32768]{0}', space=vmem, size = 0x8000, scoped, tag = 'output window, operand 0']
    %11 = vsyncpa [#allocation4], 0
    %s12 = scalar_lea.sflag [#allocation4], 1
    %13 = vsyncpa %s12, 0
    %14 = vsyncpa [#allocation5], 0
    %s15 = scalar_lea.sflag [#allocation5], 1
    %16 = vsyncpa %s15, 0
    loop: start=0, step=1, limit=4
    $region2: #{tpu_custom_call.1} parent=1 // loop_pre_header
      _
    $region3: #{tpu_custom_call.1} parent=1 // loop_header
      %s18 = sphi 0, %s22
      %p19 = scmp.ge.s32.totalorder %s18, 4
      %s28 = sphi 0, %s30
      %s31 = sphi 0, %s28
      %s32 = sphi 0, %s31
      %s48 = sphi 0, %s32
      %s52 = sphi 0, %s52
      %s54 = sphi 0, %s52
      %s55 = sphi 0, %s54
      %s69 = sphi 0, %s55
      %s73 = sphi 0, %s73
      %s75 = sphi 0, %s73
      %s76 = sphi 0, %s75
      %s90 = sphi 0, %s76
      %s94 = sphi 0, %s94
      %s96 = sphi 0, %s94
      %s97 = sphi 0, %s96
      %s111 = sphi 0, %s97
      %s115 = sphi 0, %s115
      %s117 = sphi 0, %s115
      %s118 = sphi 0, %s117
      %s132 = sphi 0, %s118
      %s136 = sphi 0, %s136
      %s138 = sphi 0, %s136
      %s139 = sphi 0, %s138
      %s153 = sphi 0, %s139
      %s159 = sphi 0, %s161
      %s162 = sphi 0, %s159
      %s163 = sphi 0, %s162
      %s179 = sphi 0, %s163
    $region4: #{tpu_custom_call.1} parent=1 // loop_header_branch
      %21 = sbr.rel (%p19) target = $region8
    $region5: #{tpu_custom_call.1} parent=1 // loop_body
      %s23 = ssub.s32 %s18, 1
      %s24 = ssub.s32 %s18, 2
      %s25 = sadd.s32 %s18, 1
      %s26 = ssub.s32 %s18, %s25
      %p27 = scmp.eq.s32.totalorder %s26, 0
      %s29 = sadd.s32 %s28, 1
      %s30 = scalar_select %p27, %s28, %s29
      %p33 = pneg %p27
      %p34 = scmp.eq.s32.totalorder %s18, 1
      %p35 = por %p33, %p34
      %p36 = scmp.ne.s32.totalorder %s28, %s31
      %p37 = scmp.eq.s32.totalorder %s18, 0
      %p38 = por %p36, %p37
      %p39 = scmp.ne.s32.totalorder %s28, %s31
      %p40 = scmp.eq.s32.totalorder %s23, 1
      %p41 = por %p39, %p40
      %p42 = scmp.ne.s32.totalorder %s31, %s32
      %p43 = scmp.eq.s32.totalorder %s23, 0
      %p44 = por %p42, %p43
      %p45 = scmp.ne.s32.totalorder %s31, %s32
      %p46 = scmp.eq.s32.totalorder %s24, 1
      %p47 = por %p45, %p46
      %p49 = scmp.ne.s32.totalorder %s32, %s48
      %p50 = scmp.eq.s32.totalorder %s24, 0
      %p51 = por %p49, %p50
      %s53 = sadd.s32 %s52, 1
      %p56 = scmp.eq.s32.totalorder %s18, 1
      %p57 = scmp.ne.s32.totalorder %s52, %s54
      %p58 = scmp.eq.s32.totalorder %s18, 0
      %p59 = por %p57, %p58
      %p60 = scmp.ne.s32.totalorder %s52, %s54
      %p61 = scmp.eq.s32.totalorder %s23, 1
      %p62 = por %p60, %p61
      %p63 = scmp.ne.s32.totalorder %s54, %s55
      %p64 = scmp.eq.s32.totalorder %s23, 0
      %p65 = por %p63, %p64
      %p66 = scmp.ne.s32.totalorder %s54, %s55
      %p67 = scmp.eq.s32.totalorder %s24, 1
      %p68 = por %p66, %p67
      %p70 = scmp.ne.s32.totalorder %s55, %s69
      %p71 = scmp.eq.s32.totalorder %s24, 0
      %p72 = por %p70, %p71
      %s74 = sadd.s32 %s73, 1
      %p77 = scmp.eq.s32.totalorder %s18, 1
      %p78 = scmp.ne.s32.totalorder %s73, %s75
      %p79 = scmp.eq.s32.totalorder %s18, 0
      %p80 = por %p78, %p79
      %p81 = scmp.ne.s32.totalorder %s73, %s75
      %p82 = scmp.eq.s32.totalorder %s23, 1
      %p83 = por %p81, %p82
      %p84 = scmp.ne.s32.totalorder %s75, %s76
      %p85 = scmp.eq.s32.totalorder %s23, 0
      %p86 = por %p84, %p85
      %p87 = scmp.ne.s32.totalorder %s75, %s76
      %p88 = scmp.eq.s32.totalorder %s24, 1
      %p89 = por %p87, %p88
      %p91 = scmp.ne.s32.totalorder %s76, %s90
      %p92 = scmp.eq.s32.totalorder %s24, 0
      %p93 = por %p91, %p92
      %s95 = sadd.s32 %s94, 1
      %p98 = scmp.eq.s32.totalorder %s18, 1
      %p99 = scmp.ne.s32.totalorder %s94, %s96
      %p100 = scmp.eq.s32.totalorder %s18, 0
      %p101 = por %p99, %p100
      %p102 = scmp.ne.s32.totalorder %s94, %s96
      %p103 = scmp.eq.s32.totalorder %s23, 1
      %p104 = por %p102, %p103
      %p105 = scmp.ne.s32.totalorder %s96, %s97
      %p106 = scmp.eq.s32.totalorder %s23, 0
      %p107 = por %p105, %p106
      %p108 = scmp.ne.s32.totalorder %s96, %s97
      %p109 = scmp.eq.s32.totalorder %s24, 1
      %p110 = por %p108, %p109
      %p112 = scmp.ne.s32.totalorder %s97, %s111
      %p113 = scmp.eq.s32.totalorder %s24, 0
      %p114 = por %p112, %p113
      %s116 = sadd.s32 %s115, 1
      %p119 = scmp.eq.s32.totalorder %s18, 1
      %p120 = scmp.ne.s32.totalorder %s115, %s117
      %p121 = scmp.eq.s32.totalorder %s18, 0
      %p122 = por %p120, %p121
      %p123 = scmp.ne.s32.totalorder %s115, %s117
      %p124 = scmp.eq.s32.totalorder %s23, 1
      %p125 = por %p123, %p124
      %p126 = scmp.ne.s32.totalorder %s117, %s118
      %p127 = scmp.eq.s32.totalorder %s23, 0
      %p128 = por %p126, %p127
      %p129 = scmp.ne.s32.totalorder %s117, %s118
      %p130 = scmp.eq.s32.totalorder %s24, 1
      %p131 = por %p129, %p130
      %p133 = scmp.ne.s32.totalorder %s118, %s132
      %p134 = scmp.eq.s32.totalorder %s24, 0
      %p135 = por %p133, %p134
      %s137 = sadd.s32 %s136, 1
      %p140 = scmp.eq.s32.totalorder %s18, 1
      %p141 = scmp.ne.s32.totalorder %s136, %s138
      %p142 = scmp.eq.s32.totalorder %s18, 0
      %p143 = por %p141, %p142
      %p144 = scmp.ne.s32.totalorder %s136, %s138
      %p145 = scmp.eq.s32.totalorder %s23, 1
      %p146 = por %p144, %p145
      %p147 = scmp.ne.s32.totalorder %s138, %s139
      %p148 = scmp.eq.s32.totalorder %s23, 0
      %p149 = por %p147, %p148
      %p150 = scmp.ne.s32.totalorder %s138, %s139
      %p151 = scmp.eq.s32.totalorder %s24, 1
      %p152 = por %p150, %p151
      %p154 = scmp.ne.s32.totalorder %s139, %s153
      %p155 = scmp.eq.s32.totalorder %s24, 0
      %p156 = por %p154, %p155
      %s157 = ssub.s32 %s18, %s25
      %p158 = scmp.eq.s32.totalorder %s157, 0
      %s160 = sadd.s32 %s159, 1
      %s161 = scalar_select %p158, %s159, %s160
      %p164 = pneg %p158
      %p165 = scmp.eq.s32.totalorder %s18, 1
      %p166 = por %p164, %p165
      %p167 = scmp.ne.s32.totalorder %s159, %s162
      %p168 = scmp.eq.s32.totalorder %s18, 0
      %p169 = por %p167, %p168
      %p170 = scmp.ne.s32.totalorder %s159, %s162
      %p171 = scmp.eq.s32.totalorder %s23, 1
      %p172 = por %p170, %p171
      %p173 = scmp.ne.s32.totalorder %s162, %s163
      %p174 = scmp.eq.s32.totalorder %s23, 0
      %p175 = por %p173, %p174
      %p176 = scmp.ne.s32.totalorder %s162, %s163
      %p177 = scmp.eq.s32.totalorder %s24, 1
      %p178 = por %p176, %p177
      %p180 = scmp.ne.s32.totalorder %s163, %s179
      %p181 = scmp.eq.s32.totalorder %s24, 0
      %p182 = por %p180, %p181
      %p183 = scmp.le.s32.totalorder 1, %s18
      %p184 = scmp.lt.s32.totalorder %s18, 3
      %p185 = pnand %p183, %p184
      %p186 = pneg %p185
      // Predicated region
      $region9: #{tpu_custom_call.1} parent=5 // pred_check
        _
      $region10: #{tpu_custom_call.1} parent=5 // pred_check_branch
        %188 = sbr.rel (%p185) target = $region12
      $region11: #{tpu_custom_call.1} parent=5 // pred_region
        %s189 = ssub.s32 %s18, 1
        // Predicated region
        $region13: #{tpu_custom_call.1} parent=11 // pred_check
          %p190 = pneg %p65
        $region14: #{tpu_custom_call.1} parent=11 // pred_check_branch
          %192 = sbr.rel (%p190) target = $region16
        $region15: #{tpu_custom_call.1} parent=11 // pred_region
          _
        $region16: #{tpu_custom_call.1} parent=11 // pred_fallthru
          _
        // Predicated region
        $region17: #{tpu_custom_call.1} parent=11 // pred_check
          %p193 = pneg %p86
        $region18: #{tpu_custom_call.1} parent=11 // pred_check_branch
          %195 = sbr.rel (%p193) target = $region20
        $region19: #{tpu_custom_call.1} parent=11 // pred_region
          _
        $region20: #{tpu_custom_call.1} parent=11 // pred_fallthru
          _
        // Predicated region
        $region21: #{tpu_custom_call.1} parent=11 // pred_check
          %p196 = pneg %p107
        $region22: #{tpu_custom_call.1} parent=11 // pred_check_branch
          %198 = sbr.rel (%p196) target = $region24
        $region23: #{tpu_custom_call.1} parent=11 // pred_region
          _
        $region24: #{tpu_custom_call.1} parent=11 // pred_fallthru
          _
        // Predicated region
        $region25: #{tpu_custom_call.1} parent=11 // pred_check
          %p199 = pneg %p128
        $region26: #{tpu_custom_call.1} parent=11 // pred_check_branch
          %201 = sbr.rel (%p199) target = $region28
        $region27: #{tpu_custom_call.1} parent=11 // pred_region
          _
        $region28: #{tpu_custom_call.1} parent=11 // pred_fallthru
          _
        // Predicated region
        $region29: #{tpu_custom_call.1} parent=11 // pred_check
          %p202 = pneg %p149
        $region30: #{tpu_custom_call.1} parent=11 // pred_check_branch
          %204 = sbr.rel (%p202) target = $region32
        $region31: #{tpu_custom_call.1} parent=11 // pred_region
          _
        $region32: #{tpu_custom_call.1} parent=11 // pred_fallthru
          _
      $region12: #{tpu_custom_call.1} parent=5 // pred_fallthru
        _
      %p205 = scmp.lt.s32.totalorder %s18, 2
      // Predicated region
      $region33: #{tpu_custom_call.1} parent=5 // pred_check
        %p206 = pneg %p205
      $region34: #{tpu_custom_call.1} parent=5 // pred_check_branch
        %208 = sbr.rel (%p206) target = $region36
      $region35: #{tpu_custom_call.1} parent=5 // pred_region
        // Predicated region
        $region37: #{tpu_custom_call.1} parent=35 // pred_check
          %p209 = pneg %p38
        $region38: #{tpu_custom_call.1} parent=35 // pred_check_branch
          %211 = sbr.rel (%p209) target = $region40
        $region39: #{tpu_custom_call.1} parent=35 // pred_region
          %s212 = sand.u32 %s28, 1
          %s213 = scalar_lea.sflag [#allocation4], %s212
          %s214 = sand.u32 %s28, 1
          %s215 = smul.addr %s214, 20
          %s216 = scalar_lea.vmem [#allocation3], %s215
          %s218 = ssub.s32 320, 320
          %219 = vsyncadd %s213, %s218
          %s220 = smul.addr %s18, 5
          %s221 = smul.addr %s220, 64
          %s222 = scalar_lea.hbm %s0, %s221
          %s224 = sshll.u32 %s216, 4
          %s225 = int_to_ptr.vmem [resolvable:$true] %s224
          %227 = dma.hbm_to_vmem [thread:$0]  %s222, 320, %s225, %s213
        $region40: #{tpu_custom_call.1} parent=35 // pred_fallthru
          _
      $region36: #{tpu_custom_call.1} parent=5 // pred_fallthru
        _
      %p228 = scmp.le.s32.totalorder 1, %s18
      %p229 = scmp.lt.s32.totalorder %s18, 3
      %p230 = pnand %p228, %p229
      %p231 = pneg %p230
      // Predicated region
      $region41: #{tpu_custom_call.1} parent=5 // pred_check
        _
      $region42: #{tpu_custom_call.1} parent=5 // pred_check_branch
        %233 = sbr.rel (%p230) target = $region44
      $region43: #{tpu_custom_call.1} parent=5 // pred_region
        %s234 = ssub.s32 %s18, 1
        %s235 = sand.u32 %s31, 1
        %s236 = scalar_lea.sflag [#allocation4], %s235
        %s237 = sand.u32 %s31, 1
        %s238 = smul.addr %s237, 20
        %s239 = scalar_lea.vmem [#allocation3], %s238
        // Predicated region
        $region45: #{tpu_custom_call.1} parent=43 // pred_check
          %p240 = pneg %p44
        $region46: #{tpu_custom_call.1} parent=43 // pred_check_branch
          %242 = sbr.rel (%p240) target = $region48
        $region47: #{tpu_custom_call.1} parent=43 // pred_region
          %243 = dma.done %s236, 320
        $region48: #{tpu_custom_call.1} parent=43 // pred_fallthru
          _
        %s244 = sand.u32 %s31, 1
        %s245 = scalar_lea.sflag [#allocation4], %s244
        %s246 = sand.u32 %s31, 1
        %s247 = smul.addr %s246, 20
        %s248 = scalar_lea.vmem [#allocation3], %s247
        %p249 = pneg %p44
        %p250 = pneg %p41
        %p251 = pneg %p65
        %p252 = pneg %p62
        %p253 = pneg %p86
        %p254 = pneg %p83
        %p255 = pneg %p107
        %p256 = pneg %p104
        %p257 = pneg %p128
        %p258 = pneg %p125
        %p259 = pneg %p149
        %p260 = pneg %p146
        %p261 = pneg %p175
        %p262 = pneg %p172
        %s263 = sand.u32 %s162, 1
        %s264 = scalar_lea.sflag [#allocation5], %s263
        %s265 = sand.u32 %s162, 1
        %s266 = smul.addr %s265, 32
        %s267 = scalar_lea.vmem [#allocation6], %s266
        %v269 = vld [vmem:[%s239] sm:$0xff]
        %v270 = vld [vmem:[%s239 + $0x8] sm:$0xff]
        %v271 = vld [vmem:[%s239 + $0x10] sm:$0xf]
        %v272 = vld [vmem:[%s5] sm:$0x3]
        %vm273 = vcmp.ge.s32.totalorder %v272, 3
        %v274 = vsel %vm273, 1, 0
        %v275 = vcvt.s32.f32 %v274
        %vm276 = vcmp.lt.s32.totalorder %v272, 13
        %v277 = vsel %vm276, 1, 0
        %v278 = vcvt.s32.f32 %v277
        %v280 = vlaneseq
        %v281 = vshrl.u32 %v280, 7
        %v282 = vsub.s32 0, %v281
        %v283 = vrot.slane %v275, %v282
        %v284 = vlaneseq
        %v285 = vshrl.u32 %v284, 7
        %v286 = vsub.s32 1, %v285
        %v287 = vrot.slane %v275, %v286
        %v288 = vcombine.low %v283, %v287
        %289 = vrot.lane.b32.xlu0 %v288, 109
        %v290 = vpop.permute.xlu0 %289
        %v291 = vrot.slane %v290, 4
        %vm292 = vcmask 891904
        %v293 = vsel %vm292, %v291, %v290
        %v296 = vmul.f32 %v269, %v293
        %v297 = vmul.f32 %v270, %v291
        %v300 = vcombine.high %v296, %v296
        %301 = vrot.lane.b32.xlu0 %v296, 19
        %v302 = vpop.permute.xlu0 %301
        %303 = vrot.lane.b32.xlu0 %v300, 19
        %v304 = vpop.permute.xlu0 %303
        %305 = vrot.lane.b32.xlu0 %v297, 19
        %v306 = vpop.permute.xlu0 %305
        %vm307 = vcmask 154624
        %v308 = vsel %vm307, %v302, %v304
        %v309 = vsel %vm307, %v304, %v306
        %312 = vst [vmem:[#allocation2] sm:$0xf] %v308
        %313 = vst [vmem:[#allocation2 + $0x8] sm:$0xf] %v309
        %v316 = vcombine.low %v269, %v269
        %v317 = vcombine.low %v270, %v270
        %318 = vrot.lane.b32.xlu0 %v316, 16
        %v319 = vpop.permute.xlu0 %318
        %320 = vrot.lane.b32.xlu0 %v269, 16
        %v321 = vpop.permute.xlu0 %320
        %322 = vrot.lane.b32.xlu0 %v317, 16
        %v323 = vpop.permute.xlu0 %322
        %vm324 = vcmask 130048
        %v325 = vsel %vm324, %v319, %v321
        %v326 = vsel %vm324, %v321, %v323
        %329 = vst [vmem:[#allocation2] sm:$0xf0] %v325
        %330 = vst [vmem:[#allocation2 + $0x8] sm:$0xf0] %v326
        %v332 = vlaneseq
        %v333 = vshrl.u32 %v332, 7
        %v334 = vsub.s32 0, %v333
        %v335 = vrot.slane %v278, %v334
        %v336 = vlaneseq
        %v337 = vshrl.u32 %v336, 7
        %v338 = vsub.s32 1, %v337
        %v339 = vrot.slane %v278, %v338
        %v340 = vcombine.low %v335, %v339
        %341 = vrot.lane.b32.xlu0 %v340, 115
        %v342 = vpop.permute.xlu0 %341
        %v343 = vrot.slane %v342, 4
        %vm344 = vcmask 941056
        %v345 = vsel %vm344, %v343, %v342
        %v348 = vmul.f32 %v269, %v345
        %v349 = vmul.f32 %v270, %v343
        %v352 = vcombine.high %v348, %v348
        %353 = vrot.lane.b32.xlu0 %v348, 13
        %v354 = vpop.permute.xlu0 %353
        %355 = vrot.lane.b32.xlu0 %v352, 13
        %v356 = vpop.permute.xlu0 %355
        %357 = vrot.lane.b32.xlu0 %v349, 13
        %v358 = vpop.permute.xlu0 %357
        %vm359 = vcmask 105472
        %v360 = vsel %vm359, %v354, %v356
        %v361 = vsel %vm359, %v356, %v358
        %364 = vst [vmem:[#allocation2 + $0x10] sm:$0xf] %v360
        %365 = vst [vmem:[#allocation2 + $0x18] sm:$0xf] %v361
        %366 = vrot.lane.b32.xlu0 %v269, 99
        %v367 = vpop.permute.xlu0 %366
        %368 = vrot.lane.b32.xlu0 %v270, 99
        %v369 = vpop.permute.xlu0 %368
        %v370 = vrot.slane %v367, 4
        %v371 = vrot.slane %v369, 4
        %vm372 = vcmask 1043456
        %v373 = vsel %vm372, %v370, %v371
        %vm374 = vcmask 809984
        %v375 = vsel %vm374, %v373, %v369
        %v378 = vmul.f32 %v375, %v288
        %v380 = vcombine.low %v378, %v378
        %382 = vst [vmem:[#allocation2 + $0x10] sm:$0xf0] %v380
        %383 = vst [vmem:[#allocation2 + $0x18] sm:$0xf0] %v378
        %v384 = vcombine.high %v269, %v269
        %v385 = vcombine.high %v270, %v270
        %386 = vrot.lane.b32.xlu0 %v384, 96
        %v387 = vpop.permute.xlu0 %386
        %388 = vrot.lane.b32.xlu0 %v270, 96
        %v389 = vpop.permute.xlu0 %388
        %390 = vrot.lane.b32.xlu0 %v385, 96
        %v391 = vpop.permute.xlu0 %390
        %vm392 = vcmask 785408
        %v393 = vsel %vm392, %v387, %v389
        %v394 = vsel %vm392, %v389, %v391
        %397 = vst [vmem:[#allocation2 + $0x20] sm:$0xf] %v393
        %398 = vst [vmem:[#allocation2 + $0x28] sm:$0xf] %v394
        %399 = vrot.lane.b32.xlu0 %v269, 93
        %v400 = vpop.permute.xlu0 %399
        %401 = vrot.lane.b32.xlu0 %v270, 93
        %v402 = vpop.permute.xlu0 %401
        %v403 = vrot.slane %v400, 4
        %v404 = vrot.slane %v402, 4
        %v405 = vsel %vm372, %v403, %v404
        %vm406 = vcmask 760832
        %v407 = vsel %vm406, %v405, %v402
        %v410 = vmul.f32 %v407, %v340
        %v412 = vcombine.low %v410, %v410
        %414 = vst [vmem:[#allocation2 + $0x20] sm:$0xf0] %v412
        %415 = vst [vmem:[#allocation2 + $0x28] sm:$0xf0] %v410
        %416 = vrot.lane.b32.xlu0 %v269, 51
        %v417 = vpop.permute.xlu0 %416
        %418 = vrot.lane.b32.xlu0 %v270, 51
        %v419 = vpop.permute.xlu0 %418
        %v420 = vrot.slane %v417, 4
        %v421 = vrot.slane %v419, 4
        %v422 = vsel %vm372, %v420, %v421
        %vm423 = vcmask 416768
        %v424 = vsel %vm423, %v422, %v419
        %v426 = vmul.f32 %v424, %v288
        %v428 = vcombine.high %v426, %v426
        %430 = vst [vmem:[#allocation2 + $0x30] sm:$0xf] %v426
        %431 = vst [vmem:[#allocation2 + $0x38] sm:$0xf] %v428
        %432 = vrot.lane.b32.xlu0 %v269, 48
        %v433 = vpop.permute.xlu0 %432
        %434 = vrot.lane.b32.xlu0 %v317, 48
        %v435 = vpop.permute.xlu0 %434
        %436 = vrot.lane.b32.xlu0 %v270, 48
        %v437 = vpop.permute.xlu0 %436
        %vm438 = vcmask 392192
        %v439 = vsel %vm438, %v433, %v435
        %v440 = vsel %vm438, %v435, %v437
        %443 = vst [vmem:[#allocation2 + $0x30] sm:$0xf0] %v439
        %444 = vst [vmem:[#allocation2 + $0x38] sm:$0xf0] %v440
        %445 = vrot.lane.b32.xlu0 %v269, 45
        %v446 = vpop.permute.xlu0 %445
        %447 = vrot.lane.b32.xlu0 %v270, 45
        %v448 = vpop.permute.xlu0 %447
        %v449 = vrot.slane %v446, 4
        %v450 = vrot.slane %v448, 4
        %v451 = vsel %vm372, %v449, %v450
        %vm452 = vcmask 367616
        %v453 = vsel %vm452, %v451, %v448
        %v455 = vmul.f32 %v453, %v340
        %v457 = vcombine.high %v455, %v455
        %459 = vst [vmem:[#allocation2 + $0x40] sm:$0xf] %v455
        %460 = vst [vmem:[#allocation2 + $0x48] sm:$0xf] %v457
        %v461 = vld [vmem:[%s1] sm:$0xf]
        %v462 = vpack.c.bf16 %v461, %v461
        %v463 = vld [vmem:[#allocation2] sm:$0xff]
        %v464 = vld [vmem:[#allocation2 + $0x8] sm:$0xff]
        %v465 = vld [vmem:[#allocation2 + $0x10] sm:$0xff]
        %v466 = vld [vmem:[#allocation2 + $0x18] sm:$0xff]
        %v467 = vld [vmem:[#allocation2 + $0x20] sm:$0xff]
        %v468 = vld [vmem:[#allocation2 + $0x28] sm:$0xff]
        %v469 = vld [vmem:[#allocation2 + $0x30] sm:$0xff]
        %v470 = vld [vmem:[#allocation2 + $0x38] sm:$0xff]
        %v471 = vld [vmem:[#allocation2 + $0x40] sm:$0xf]
        %v472 = vld [vmem:[#allocation2 + $0x48] sm:$0xf]
        %v473 = vpack.c.bf16 %v465, %v463
        %v474 = vpack.c.bf16 %v466, %v464
        %v475 = vpack.c.bf16 %v469, %v467
        %v476 = vpack.c.bf16 %v470, %v468
        %v477 = vpack.c.bf16 %v471, %v471
        %v478 = vpack.c.bf16 %v472, %v472
        %v479 = vld [vmem:[%s2] sm:$0xf]
        %481 = vset.pattern.permute.xlu0 0
        %482 = vperm.xlu0 %481, %v479
        %v483 = vpop.permute.xlu0 %482
        %vm485 = vcmask 293888
        %v487 = vsel %vm485, %v462, 0
        %vm489 = vcmask 1041408
        %v491 = vsel %vm489, %v477, 0
        %v494 = vsel %vm489, %v478, 0
        %496 = vmatprep.subr.bf16.mxu0 %v474
        %497 = vmatpush1.bf16.msra.mxu0 %v473
        %498 = vmatprep.subr.bf16.mxu0 %v476
        %499 = vmatpush1.bf16.msra.mxu0 %v475
        %500 = vmatprep.subr.bf16.mxu0 %v494
        %501 = vmatpush1.bf16.msra.mxu0 %v491
        %502 = vmatprep.subr.bf16.mxu0 0
        %503 = vmatpush1.bf16.msra.mxu0 0
        %504 = vmatprep.subr.bf16.mxu0 0
        %505 = vmatpush1.bf16.msra.mxu0 0
        %506 = vmatprep.subr.bf16.mxu0 0
        %507 = vmatpush1.bf16.msra.mxu0 0
        %508 = vmatprep.subr.bf16.mxu0 0
        %509 = vmatpush1.bf16.msra.mxu0 0
        %510 = vmatprep.subr.bf16.mxu0 0
        %511 = vmatpush1.bf16.msra.mxu0 0
        %512 = vmatprep.subr.bf16.mxu0 0
        %513 = vmatpush1.bf16.msra.mxu0 0
        %514 = vmatprep.subr.bf16.mxu0 0
        %515 = vmatpush1.bf16.msra.mxu0 0
        %516 = vmatprep.subr.bf16.mxu0 0
        %517 = vmatpush1.bf16.msra.mxu0 0
        %518 = vmatprep.subr.bf16.mxu0 0
        %519 = vmatpush1.bf16.msra.mxu0 0
        %520 = vmatprep.subr.bf16.mxu0 0
        %521 = vmatpush1.bf16.msra.mxu0 0
        %522 = vmatprep.subr.bf16.mxu0 0
        %523 = vmatpush1.bf16.msra.mxu0 0
        %524 = vmatprep.subr.bf16.mxu0 0
        %525 = vmatpush1.bf16.msra.mxu0 0
        %526 = vmatprep.subr.bf16.mxu0 0
        %527 = vmatpush1.bf16.msra.mxu0 0
        %528 = vmatprep.mubr.bf16.mxu0 0
        %529 = vmatmul.mubr.bf16.gmra.mrb[0].mxu0 %v487
        %v530 = vpop.f32.mrb[0].mxu0
        %v531 = vadd.f32 %v483, %v530
        %v532 = vpop.f32.mrb[0].mxu0
        %v533 = vadd.f32 %v483, %v532
        %v534 = vpop.f32.mrb[0].mxu0
        %v535 = vpop.f32.mrb[0].mxu0
        %536 = vdwg.mxu0
        %537 = vst [vmem:[%s267] sm:$0xf] %v531
        %538 = vst [vmem:[%s267 + $0x8] sm:$0xf] %v533
        %vm539 = vcmp.ge.s32.totalorder %v272, 6
        %v540 = vsel %vm539, 1, 0
        %v541 = vcvt.s32.f32 %v540
        %vm542 = vcmp.lt.s32.totalorder %v272, 10
        %v543 = vsel %vm542, 1, 0
        %v544 = vcvt.s32.f32 %v543
        %v546 = vlaneseq
        %v547 = vshrl.u32 %v546, 7
        %v548 = vsub.s32 0, %v547
        %v549 = vrot.slane %v541, %v548
        %v550 = vlaneseq
        %v551 = vshrl.u32 %v550, 7
        %v552 = vsub.s32 1, %v551
        %v553 = vrot.slane %v541, %v552
        %v554 = vcombine.low %v549, %v553
        %555 = vrot.lane.b32.xlu0 %v554, 58
        %v556 = vpop.permute.xlu0 %555
        %v557 = vrot.slane %v556, 4
        %vm558 = vcmask 474112
        %v559 = vsel %vm558, %v557, %v556
        %v562 = vmul.f32 %v269, %v559
        %v563 = vmul.f32 %v270, %v557
        %v566 = vcombine.high %v562, %v562
        %567 = vrot.lane.b32.xlu0 %v562, 70
        %v568 = vpop.permute.xlu0 %567
        %569 = vrot.lane.b32.xlu0 %v566, 70
        %v570 = vpop.permute.xlu0 %569
        %571 = vrot.lane.b32.xlu0 %v563, 70
        %v572 = vpop.permute.xlu0 %571
        %vm573 = vcmask 572416
        %v574 = vsel %vm573, %v568, %v570
        %v575 = vsel %vm573, %v570, %v572
        %578 = vst [vmem:[#allocation2] sm:$0xf] %v574
        %579 = vst [vmem:[#allocation2 + $0x8] sm:$0xf] %v575
        %580 = vrot.lane.b32.xlu0 %v316, 64
        %v581 = vpop.permute.xlu0 %580
        %582 = vrot.lane.b32.xlu0 %v269, 64
        %v583 = vpop.permute.xlu0 %582
        %584 = vrot.lane.b32.xlu0 %v317, 64
        %v585 = vpop.permute.xlu0 %584
        %vm586 = vcmask 523264
        %v587 = vsel %vm586, %v581, %v583
        %v588 = vsel %vm586, %v583, %v585
        %591 = vst [vmem:[#allocation2] sm:$0xf0] %v587
        %592 = vst [vmem:[#allocation2 + $0x8] sm:$0xf0] %v588
        %v594 = vlaneseq
        %v595 = vshrl.u32 %v594, 7
        %v596 = vsub.s32 0, %v595
        %v597 = vrot.slane %v544, %v596
        %v598 = vlaneseq
        %v599 = vshrl.u32 %v598, 7
        %v600 = vsub.s32 1, %v599
        %v601 = vrot.slane %v544, %v600
        %v602 = vcombine.low %v597, %v601
        %603 = vrot.lane.b32.xlu0 %v602, 70
        %v604 = vpop.permute.xlu0 %603
        %v605 = vrot.slane %v604, 4
        %v606 = vsel %vm573, %v605, %v604
        %v609 = vmul.f32 %v269, %v606
        %v610 = vmul.f32 %v270, %v605
        %v613 = vcombine.high %v609, %v609
        %614 = vrot.lane.b32.xlu0 %v609, 58
        %v615 = vpop.permute.xlu0 %614
        %616 = vrot.lane.b32.xlu0 %v613, 58
        %v617 = vpop.permute.xlu0 %616
        %618 = vrot.lane.b32.xlu0 %v610, 58
        %v619 = vpop.permute.xlu0 %618
        %v620 = vsel %vm558, %v615, %v617
        %v621 = vsel %vm558, %v617, %v619
        %624 = vst [vmem:[#allocation2 + $0x10] sm:$0xf] %v620
        %625 = vst [vmem:[#allocation2 + $0x18] sm:$0xf] %v621
        %626 = vrot.lane.b32.xlu0 %v269, 102
        %v627 = vpop.permute.xlu0 %626
        %628 = vrot.lane.b32.xlu0 %v270, 102
        %v629 = vpop.permute.xlu0 %628
        %v630 = vrot.slane %v627, 4
        %v631 = vrot.slane %v629, 4
        %v632 = vsel %vm372, %v630, %v631
        %vm633 = vcmask 834560
        %v634 = vsel %vm633, %v632, %v629
        %v637 = vmul.f32 %v634, %v554
        %v639 = vcombine.low %v637, %v637
        %641 = vst [vmem:[#allocation2 + $0x10] sm:$0xf0] %v639
        %642 = vst [vmem:[#allocation2 + $0x18] sm:$0xf0] %v637
        %643 = vst [vmem:[#allocation2 + $0x20] sm:$0xf] %v393
        %644 = vst [vmem:[#allocation2 + $0x28] sm:$0xf] %v394
        %645 = vrot.lane.b32.xlu0 %v269, 90
        %v646 = vpop.permute.xlu0 %645
        %647 = vrot.lane.b32.xlu0 %v270, 90
        %v648 = vpop.permute.xlu0 %647
        %v649 = vrot.slane %v646, 4
        %v650 = vrot.slane %v648, 4
        %v651 = vsel %vm372, %v649, %v650
        %vm652 = vcmask 736256
        %v653 = vsel %vm652, %v651, %v648
        %v656 = vmul.f32 %v653, %v602
        %v658 = vcombine.low %v656, %v656
        %660 = vst [vmem:[#allocation2 + $0x20] sm:$0xf0] %v658
        %661 = vst [vmem:[#allocation2 + $0x28] sm:$0xf0] %v656
        %662 = vrot.lane.b32.xlu0 %v269, 6
        %v663 = vpop.permute.xlu0 %662
        %664 = vrot.lane.b32.xlu0 %v270, 6
        %v665 = vpop.permute.xlu0 %664
        %v666 = vrot.slane %v663, 4
        %v667 = vrot.slane %v665, 4
        %v668 = vsel %vm372, %v666, %v667
        %vm669 = vcmask 48128
        %v670 = vsel %vm669, %v668, %v665
        %v672 = vmul.f32 %v670, %v554
        %v674 = vcombine.high %v672, %v672
        %676 = vst [vmem:[#allocation2 + $0x30] sm:$0xf] %v672
        %677 = vst [vmem:[#allocation2 + $0x38] sm:$0xf] %v674
        %679 = vst [vmem:[#allocation2 + $0x30] sm:$0xf0] %v317
        %680 = vst [vmem:[#allocation2 + $0x38] sm:$0xf0] %v270
        %681 = vrot.lane.b32.xlu0 %v602, 6
        %v682 = vpop.permute.xlu0 %681
        %v683 = vrot.slane %v682, 4
        %v684 = vsel %vm669, %v683, %v682
        %v687 = vmul.f32 %v270, %v684
        %v688 = vmul.f32 %v271, %v683
        %v691 = vcombine.high %v687, %v687
        %692 = vrot.lane.b32.xlu0 %v687, 122
        %v693 = vpop.permute.xlu0 %692
        %694 = vrot.lane.b32.xlu0 %v691, 122
        %v695 = vpop.permute.xlu0 %694
        %696 = vrot.lane.b32.xlu0 %v688, 122
        %v697 = vpop.permute.xlu0 %696
        %vm698 = vcmask 998400
        %v699 = vsel %vm698, %v693, %v695
        %v700 = vsel %vm698, %v695, %v697
        %703 = vst [vmem:[#allocation2 + $0x40] sm:$0xf] %v699
        %704 = vst [vmem:[#allocation2 + $0x48] sm:$0xf] %v700
        %s705 = scalar_lea.vmem %s1, 4
        %v706 = vld [vmem:[%s705] sm:$0xf]
        %v707 = vpack.c.bf16 %v706, %v706
        %v708 = vld [vmem:[#allocation2] sm:$0xff]
        %v709 = vld [vmem:[#allocation2 + $0x8] sm:$0xff]
        %v710 = vld [vmem:[#allocation2 + $0x10] sm:$0xff]
        %v711 = vld [vmem:[#allocation2 + $0x18] sm:$0xff]
        %v712 = vld [vmem:[#allocation2 + $0x20] sm:$0xff]
        %v713 = vld [vmem:[#allocation2 + $0x28] sm:$0xff]
        %v714 = vld [vmem:[#allocation2 + $0x30] sm:$0xff]
        %v715 = vld [vmem:[#allocation2 + $0x38] sm:$0xff]
        %v716 = vld [vmem:[#allocation2 + $0x40] sm:$0xf]
        %v717 = vld [vmem:[#allocation2 + $0x48] sm:$0xf]
        %v718 = vpack.c.bf16 %v710, %v708
        %v719 = vpack.c.bf16 %v711, %v709
        %v720 = vpack.c.bf16 %v714, %v712
        %v721 = vpack.c.bf16 %v715, %v713
        %v722 = vpack.c.bf16 %v716, %v716
        %v723 = vpack.c.bf16 %v717, %v717
        %s724 = scalar_lea.vmem %s2, 4
        %v725 = vld [vmem:[%s724] sm:$0xf]
        %727 = vset.pattern.permute.xlu0 0
        %728 = vperm.xlu0 %727, %v725
        %v729 = vpop.permute.xlu0 %728
        %v732 = vsel %vm485, %v707, 0
        %v735 = vsel %vm489, %v722, 0
        %v738 = vsel %vm489, %v723, 0
        %740 = vmatprep.subr.bf16.mxu0 %v719
        %741 = vmatpush1.bf16.msra.mxu0 %v718
        %742 = vmatprep.subr.bf16.mxu0 %v721
        %743 = vmatpush1.bf16.msra.mxu0 %v720
        %744 = vmatprep.subr.bf16.mxu0 %v738
        %745 = vmatpush1.bf16.msra.mxu0 %v735
        %746 = vmatprep.subr.bf16.mxu0 0
        %747 = vmatpush1.bf16.msra.mxu0 0
        %748 = vmatprep.subr.bf16.mxu0 0
        %749 = vmatpush1.bf16.msra.mxu0 0
        %750 = vmatprep.subr.bf16.mxu0 0
        %751 = vmatpush1.bf16.msra.mxu0 0
        %752 = vmatprep.subr.bf16.mxu0 0
        %753 = vmatpush1.bf16.msra.mxu0 0
        %754 = vmatprep.subr.bf16.mxu0 0
        %755 = vmatpush1.bf16.msra.mxu0 0
        %756 = vmatprep.subr.bf16.mxu0 0
        %757 = vmatpush1.bf16.msra.mxu0 0
        %758 = vmatprep.subr.bf16.mxu0 0
        %759 = vmatpush1.bf16.msra.mxu0 0
        %760 = vmatprep.subr.bf16.mxu0 0
        %761 = vmatpush1.bf16.msra.mxu0 0
        %762 = vmatprep.subr.bf16.mxu0 0
        %763 = vmatpush1.bf16.msra.mxu0 0
        %764 = vmatprep.subr.bf16.mxu0 0
        %765 = vmatpush1.bf16.msra.mxu0 0
        %766 = vmatprep.subr.bf16.mxu0 0
        %767 = vmatpush1.bf16.msra.mxu0 0
        %768 = vmatprep.subr.bf16.mxu0 0
        %769 = vmatpush1.bf16.msra.mxu0 0
        %770 = vmatprep.subr.bf16.mxu0 0
        %771 = vmatpush1.bf16.msra.mxu0 0
        %772 = vmatprep.mubr.bf16.mxu0 0
        %773 = vmatmul.mubr.bf16.gmra.mrb[0].mxu0 %v732
        %v774 = vpop.f32.mrb[0].mxu0
        %v775 = vadd.f32 %v729, %v774
        %v776 = vpop.f32.mrb[0].mxu0
        %v777 = vadd.f32 %v729, %v776
        %v778 = vpop.f32.mrb[0].mxu0
        %v779 = vpop.f32.mrb[0].mxu0
        %780 = vdwg.mxu0
        %v783 = vrot.slane %v775, 4
        %v784 = vrot.slane %v777, 4
        %787 = vst [vmem:[%s267] sm:$0xf0] %v783
        %788 = vst [vmem:[%s267 + $0x8] sm:$0xf0] %v784
        %vm789 = vcmp.ge.s32.totalorder %v272, 9
        %v790 = vsel %vm789, 1, 0
        %v791 = vcvt.s32.f32 %v790
        %vm792 = vcmp.lt.s32.totalorder %v272, 7
        %v793 = vsel %vm792, 1, 0
        %v794 = vcvt.s32.f32 %v793
        %v796 = vlaneseq
        %v797 = vshrl.u32 %v796, 7
        %v798 = vsub.s32 0, %v797
        %v799 = vrot.slane %v791, %v798
        %v800 = vlaneseq
        %v801 = vshrl.u32 %v800, 7
        %v802 = vsub.s32 1, %v801
        %v803 = vrot.slane %v791, %v802
        %v804 = vcombine.low %v799, %v803
        %805 = vrot.lane.b32.xlu0 %v804, 7
        %v806 = vpop.permute.xlu0 %805
        %v807 = vrot.slane %v806, 4
        %vm808 = vcmask 56320
        %v809 = vsel %vm808, %v807, %v806
        %v812 = vmul.f32 %v269, %v809
        %v813 = vmul.f32 %v270, %v807
        %v816 = vcombine.high %v812, %v812
        %817 = vrot.lane.b32.xlu0 %v812, 121
        %v818 = vpop.permute.xlu0 %817
        %819 = vrot.lane.b32.xlu0 %v816, 121
        %v820 = vpop.permute.xlu0 %819
        %821 = vrot.lane.b32.xlu0 %v813, 121
        %v822 = vpop.permute.xlu0 %821
        %vm823 = vcmask 990208
        %v824 = vsel %vm823, %v818, %v820
        %v825 = vsel %vm823, %v820, %v822
        %828 = vst [vmem:[#allocation2] sm:$0xf] %v824
        %829 = vst [vmem:[#allocation2 + $0x8] sm:$0xf] %v825
        %830 = vrot.lane.b32.xlu0 %v316, 112
        %v831 = vpop.permute.xlu0 %830
        %832 = vrot.lane.b32.xlu0 %v269, 112
        %v833 = vpop.permute.xlu0 %832
        %834 = vrot.lane.b32.xlu0 %v317, 112
        %v835 = vpop.permute.xlu0 %834
        %vm836 = vcmask 916480
        %v837 = vsel %vm836, %v831, %v833
        %v838 = vsel %vm836, %v833, %v835
        %841 = vst [vmem:[#allocation2] sm:$0xf0] %v837
        %842 = vst [vmem:[#allocation2 + $0x8] sm:$0xf0] %v838
        %v844 = vlaneseq
        %v845 = vshrl.u32 %v844, 7
        %v846 = vsub.s32 0, %v845
        %v847 = vrot.slane %v794, %v846
        %v848 = vlaneseq
        %v849 = vshrl.u32 %v848, 7
        %v850 = vsub.s32 1, %v849
        %v851 = vrot.slane %v794, %v850
        %v852 = vcombine.low %v847, %v851
        %853 = vrot.lane.b32.xlu0 %v852, 25
        %v854 = vpop.permute.xlu0 %853
        %v855 = vrot.slane %v854, 4
        %vm856 = vcmask 203776
        %v857 = vsel %vm856, %v855, %v854
        %v860 = vmul.f32 %v269, %v857
        %v861 = vmul.f32 %v270, %v855
        %v864 = vcombine.high %v860, %v860
        %865 = vrot.lane.b32.xlu0 %v860, 103
        %v866 = vpop.permute.xlu0 %865
        %867 = vrot.lane.b32.xlu0 %v864, 103
        %v868 = vpop.permute.xlu0 %867
        %869 = vrot.lane.b32.xlu0 %v861, 103
        %v870 = vpop.permute.xlu0 %869
        %vm871 = vcmask 842752
        %v872 = vsel %vm871, %v866, %v868
        %v873 = vsel %vm871, %v868, %v870
        %876 = vst [vmem:[#allocation2 + $0x10] sm:$0xf] %v872
        %877 = vst [vmem:[#allocation2 + $0x18] sm:$0xf] %v873
        %878 = vrot.lane.b32.xlu0 %v269, 105
        %v879 = vpop.permute.xlu0 %878
        %880 = vrot.lane.b32.xlu0 %v270, 105
        %v881 = vpop.permute.xlu0 %880
        %v882 = vrot.slane %v879, 4
        %v883 = vrot.slane %v881, 4
        %v884 = vsel %vm372, %v882, %v883
        %vm885 = vcmask 859136
        %v886 = vsel %vm885, %v884, %v881
        %v889 = vmul.f32 %v886, %v804
        %v891 = vcombine.low %v889, %v889
        %893 = vst [vmem:[#allocation2 + $0x10] sm:$0xf0] %v891
        %894 = vst [vmem:[#allocation2 + $0x18] sm:$0xf0] %v889
        %895 = vst [vmem:[#allocation2 + $0x20] sm:$0xf] %v393
        %896 = vst [vmem:[#allocation2 + $0x28] sm:$0xf] %v394
        %897 = vrot.lane.b32.xlu0 %v269, 87
        %v898 = vpop.permute.xlu0 %897
        %899 = vrot.lane.b32.xlu0 %v270, 87
        %v900 = vpop.permute.xlu0 %899
        %v901 = vrot.slane %v898, 4
        %v902 = vrot.slane %v900, 4
        %v903 = vsel %vm372, %v901, %v902
        %vm904 = vcmask 711680
        %v905 = vsel %vm904, %v903, %v900
        %v908 = vmul.f32 %v905, %v852
        %v910 = vcombine.low %v908, %v908
        %912 = vst [vmem:[#allocation2 + $0x20] sm:$0xf0] %v910
        %913 = vst [vmem:[#allocation2 + $0x28] sm:$0xf0] %v908
        %914 = vrot.lane.b32.xlu0 %v804, 39
        %v915 = vpop.permute.xlu0 %914
        %v916 = vrot.slane %v915, 4
        %vm917 = vcmask 318464
        %v918 = vsel %vm917, %v916, %v915
        %v921 = vmul.f32 %v270, %v918
        %v922 = vmul.f32 %v271, %v916
        %v925 = vcombine.high %v921, %v921
        %926 = vrot.lane.b32.xlu0 %v921, 89
        %v927 = vpop.permute.xlu0 %926
        %928 = vrot.lane.b32.xlu0 %v925, 89
        %v929 = vpop.permute.xlu0 %928
        %930 = vrot.lane.b32.xlu0 %v922, 89
        %v931 = vpop.permute.xlu0 %930
        %vm932 = vcmask 728064
        %v933 = vsel %vm932, %v927, %v929
        %v934 = vsel %vm932, %v929, %v931
        %937 = vst [vmem:[#allocation2 + $0x30] sm:$0xf] %v933
        %938 = vst [vmem:[#allocation2 + $0x38] sm:$0xf] %v934
        %v940 = vcombine.low %v271, %v271
        %941 = vrot.lane.b32.xlu0 %v317, 80
        %v942 = vpop.permute.xlu0 %941
        %943 = vrot.lane.b32.xlu0 %v270, 80
        %v944 = vpop.permute.xlu0 %943
        %945 = vrot.lane.b32.xlu0 %v940, 80
        %v946 = vpop.permute.xlu0 %945
        %vm947 = vcmask 654336
        %v948 = vsel %vm947, %v942, %v944
        %v949 = vsel %vm947, %v944, %v946
        %952 = vst [vmem:[#allocation2 + $0x30] sm:$0xf0] %v948
        %953 = vst [vmem:[#allocation2 + $0x38] sm:$0xf0] %v949
        %954 = vrot.lane.b32.xlu0 %v852, 57
        %v955 = vpop.permute.xlu0 %954
        %v956 = vrot.slane %v955, 4
        %vm957 = vcmask 465920
        %v958 = vsel %vm957, %v956, %v955
        %v961 = vmul.f32 %v270, %v958
        %v962 = vmul.f32 %v271, %v956
        %v965 = vcombine.high %v961, %v961
        %966 = vrot.lane.b32.xlu0 %v961, 71
        %v967 = vpop.permute.xlu0 %966
        %968 = vrot.lane.b32.xlu0 %v965, 71
        %v969 = vpop.permute.xlu0 %968
        %970 = vrot.lane.b32.xlu0 %v962, 71
        %v971 = vpop.permute.xlu0 %970
        %vm972 = vcmask 580608
        %v973 = vsel %vm972, %v967, %v969
        %v974 = vsel %vm972, %v969, %v971
        %977 = vst [vmem:[#allocation2 + $0x40] sm:$0xf] %v973
        %978 = vst [vmem:[#allocation2 + $0x48] sm:$0xf] %v974
        %s979 = scalar_lea.vmem %s1, 8
        %v980 = vld [vmem:[%s979] sm:$0xf]
        %v981 = vpack.c.bf16 %v980, %v980
        %v982 = vld [vmem:[#allocation2] sm:$0xff]
        %v983 = vld [vmem:[#allocation2 + $0x8] sm:$0xff]
        %v984 = vld [vmem:[#allocation2 + $0x10] sm:$0xff]
        %v985 = vld [vmem:[#allocation2 + $0x18] sm:$0xff]
        %v986 = vld [vmem:[#allocation2 + $0x20] sm:$0xff]
        %v987 = vld [vmem:[#allocation2 + $0x28] sm:$0xff]
        %v988 = vld [vmem:[#allocation2 + $0x30] sm:$0xff]
        %v989 = vld [vmem:[#allocation2 + $0x38] sm:$0xff]
        %v990 = vld [vmem:[#allocation2 + $0x40] sm:$0xf]
        %v991 = vld [vmem:[#allocation2 + $0x48] sm:$0xf]
        %v992 = vpack.c.bf16 %v984, %v982
        %v993 = vpack.c.bf16 %v985, %v983
        %v994 = vpack.c.bf16 %v988, %v986
        %v995 = vpack.c.bf16 %v989, %v987
        %v996 = vpack.c.bf16 %v990, %v990
        %v997 = vpack.c.bf16 %v991, %v991
        %s998 = scalar_lea.vmem %s2, 8
        %v999 = vld [vmem:[%s998] sm:$0xf]
        %1001 = vset.pattern.permute.xlu0 0
        %1002 = vperm.xlu0 %1001, %v999
        %v1003 = vpop.permute.xlu0 %1002
        %v1006 = vsel %vm485, %v981, 0
        %v1009 = vsel %vm489, %v996, 0
        %v1012 = vsel %vm489, %v997, 0
        %1014 = vmatprep.subr.bf16.mxu0 %v993
        %1015 = vmatpush1.bf16.msra.mxu0 %v992
        %1016 = vmatprep.subr.bf16.mxu0 %v995
        %1017 = vmatpush1.bf16.msra.mxu0 %v994
        %1018 = vmatprep.subr.bf16.mxu0 %v1012
        %1019 = vmatpush1.bf16.msra.mxu0 %v1009
        %1020 = vmatprep.subr.bf16.mxu0 0
        %1021 = vmatpush1.bf16.msra.mxu0 0
        %1022 = vmatprep.subr.bf16.mxu0 0
        %1023 = vmatpush1.bf16.msra.mxu0 0
        %1024 = vmatprep.subr.bf16.mxu0 0
        %1025 = vmatpush1.bf16.msra.mxu0 0
        %1026 = vmatprep.subr.bf16.mxu0 0
        %1027 = vmatpush1.bf16.msra.mxu0 0
        %1028 = vmatprep.subr.bf16.mxu0 0
        %1029 = vmatpush1.bf16.msra.mxu0 0
        %1030 = vmatprep.subr.bf16.mxu0 0
        %1031 = vmatpush1.bf16.msra.mxu0 0
        %1032 = vmatprep.subr.bf16.mxu0 0
        %1033 = vmatpush1.bf16.msra.mxu0 0
        %1034 = vmatprep.subr.bf16.mxu0 0
        %1035 = vmatpush1.bf16.msra.mxu0 0
        %1036 = vmatprep.subr.bf16.mxu0 0
        %1037 = vmatpush1.bf16.msra.mxu0 0
        %1038 = vmatprep.subr.bf16.mxu0 0
        %1039 = vmatpush1.bf16.msra.mxu0 0
        %1040 = vmatprep.subr.bf16.mxu0 0
        %1041 = vmatpush1.bf16.msra.mxu0 0
        %1042 = vmatprep.subr.bf16.mxu0 0
        %1043 = vmatpush1.bf16.msra.mxu0 0
        %1044 = vmatprep.subr.bf16.mxu0 0
        %1045 = vmatpush1.bf16.msra.mxu0 0
        %1046 = vmatprep.mubr.bf16.mxu0 0
        %1047 = vmatmul.mubr.bf16.gmra.mrb[0].mxu0 %v1006
        %v1048 = vpop.f32.mrb[0].mxu0
        %v1049 = vadd.f32 %v1003, %v1048
        %v1050 = vpop.f32.mrb[0].mxu0
        %v1051 = vadd.f32 %v1003, %v1050
        %v1052 = vpop.f32.mrb[0].mxu0
        %v1053 = vpop.f32.mrb[0].mxu0
        %1054 = vdwg.mxu0
        %1055 = vst [vmem:[%s267 + $0x10] sm:$0xf] %v1049
        %1056 = vst [vmem:[%s267 + $0x18] sm:$0xf] %v1051
        %v1057 = vld [vmem:[%s3] sm:$0xf]
        %vm1058 = vcmask 31744
        %v1060 = vsel %vm1058, %v1057, 0
        %v1062 = vsel %vm372, %v269, 0
        %v1064 = vsel %vm372, %v384, 0
        %v1066 = vsel %vm372, %v270, 0
        %v1068 = vsel %vm372, %v385, 0
        %v1070 = vsel %vm372, %v271, 0
        %1072 = vmatprep.subr.mxu0 %v1064
        %1073 = vmatpush1.msra.mxu0 %v1062
        %1074 = vmatprep.subr.mxu0 0.0
        %1075 = vmatpush1.msra.mxu0 0.0
        %1076 = vmatprep.subr.mxu0 0.0
        %1077 = vmatpush1.msra.mxu0 0.0
        %1078 = vmatprep.subr.mxu0 0.0
        %1079 = vmatpush1.msra.mxu0 0.0
        %1080 = vmatprep.subr.mxu0 0.0
        %1081 = vmatpush1.msra.mxu0 0.0
        %1082 = vmatprep.subr.mxu0 0.0
        %1083 = vmatpush1.msra.mxu0 0.0
        %1084 = vmatprep.subr.mxu0 0.0
        %1085 = vmatpush1.msra.mxu0 0.0
        %1086 = vmatprep.subr.mxu0 0.0
        %1087 = vmatpush1.msra.mxu0 0.0
        %1088 = vmatprep.subr.mxu0 0.0
        %1089 = vmatpush1.msra.mxu0 0.0
        %1090 = vmatprep.subr.mxu0 0.0
        %1091 = vmatpush1.msra.mxu0 0.0
        %1092 = vmatprep.subr.mxu0 0.0
        %1093 = vmatpush1.msra.mxu0 0.0
        %1094 = vmatprep.subr.mxu0 0.0
        %1095 = vmatpush1.msra.mxu0 0.0
        %1096 = vmatprep.subr.mxu0 0.0
        %1097 = vmatpush1.msra.mxu0 0.0
        %1098 = vmatprep.subr.mxu0 0.0
        %1099 = vmatpush1.msra.mxu0 0.0
        %1100 = vmatprep.subr.mxu0 0.0
        %1101 = vmatpush1.msra.mxu0 0.0
        %1102 = vmatprep.subr.mxu0 0.0
        %1103 = vmatpush1.msra.mxu0 0.0
        %1104 = vmatprep.subr.mxu0 0.0
        %1105 = vmatpush1.msra.mxu0 0.0
        %1106 = vmatprep.subr.mxu0 0.0
        %1107 = vmatpush1.msra.mxu0 0.0
        %1108 = vmatprep.subr.mxu0 0.0
        %1109 = vmatpush1.msra.mxu0 0.0
        %1110 = vmatprep.subr.mxu0 0.0
        %1111 = vmatpush1.msra.mxu0 0.0
        %1112 = vmatprep.subr.mxu0 0.0
        %1113 = vmatpush1.msra.mxu0 0.0
        %1114 = vmatprep.subr.mxu0 0.0
        %1115 = vmatpush1.msra.mxu0 0.0
        %1116 = vmatprep.subr.mxu0 0.0
        %1117 = vmatpush1.msra.mxu0 0.0
        %1118 = vmatprep.subr.mxu0 0.0
        %1119 = vmatpush1.msra.mxu0 0.0
        %1120 = vmatprep.subr.mxu0 0.0
        %1121 = vmatpush1.msra.mxu0 0.0
        %1122 = vmatprep.subr.mxu0 0.0
        %1123 = vmatpush1.msra.mxu0 0.0
        %1124 = vmatprep.subr.mxu0 0.0
        %1125 = vmatpush1.msra.mxu0 0.0
        %1126 = vmatprep.subr.mxu0 0.0
        %1127 = vmatpush1.msra.mxu0 0.0
        %1128 = vmatprep.subr.mxu0 0.0
        %1129 = vmatpush1.msra.mxu0 0.0
        %1130 = vmatprep.subr.mxu0 0.0
        %1131 = vmatpush1.msra.mxu0 0.0
        %1132 = vmatprep.subr.mxu0 0.0
        %1133 = vmatpush1.msra.mxu0 0.0
        %1134 = vmatprep.subr.mxu0 0.0
        %1135 = vmatpush1.msra.mxu0 0.0
        %1136 = vmatprep.mubr.f32.mxu0 0.0
        %1137 = vmatmul.mubr.f32.gmra.mrb[0].mxu0 %v1060
        %v1138 = vpop.f32.mrb[0].mxu0
        %v1139 = vadd.f32 0.0, %v1138
        %v1140 = vpop.f32.mrb[0].mxu0
        %v1141 = vadd.f32 0.0, %v1140
        %1142 = vdwg.mxu0
        %1143 = vmatprep.subr.mxu0 %v1068
        %1144 = vmatpush1.msra.mxu0 %v1066
        %1145 = vmatprep.subr.mxu0 0.0
        %1146 = vmatpush1.msra.mxu0 0.0
        %1147 = vmatprep.subr.mxu0 0.0
        %1148 = vmatpush1.msra.mxu0 0.0
        %1149 = vmatprep.subr.mxu0 0.0
        %1150 = vmatpush1.msra.mxu0 0.0
        %1151 = vmatprep.subr.mxu0 0.0
        %1152 = vmatpush1.msra.mxu0 0.0
        %1153 = vmatprep.subr.mxu0 0.0
        %1154 = vmatpush1.msra.mxu0 0.0
        %1155 = vmatprep.subr.mxu0 0.0
        %1156 = vmatpush1.msra.mxu0 0.0
        %1157 = vmatprep.subr.mxu0 0.0
        %1158 = vmatpush1.msra.mxu0 0.0
        %1159 = vmatprep.subr.mxu0 0.0
        %1160 = vmatpush1.msra.mxu0 0.0
        %1161 = vmatprep.subr.mxu0 0.0
        %1162 = vmatpush1.msra.mxu0 0.0
        %1163 = vmatprep.subr.mxu0 0.0
        %1164 = vmatpush1.msra.mxu0 0.0
        %1165 = vmatprep.subr.mxu0 0.0
        %1166 = vmatpush1.msra.mxu0 0.0
        %1167 = vmatprep.subr.mxu0 0.0
        %1168 = vmatpush1.msra.mxu0 0.0
        %1169 = vmatprep.subr.mxu0 0.0
        %1170 = vmatpush1.msra.mxu0 0.0
        %1171 = vmatprep.subr.mxu0 0.0
        %1172 = vmatpush1.msra.mxu0 0.0
        %1173 = vmatprep.subr.mxu0 0.0
        %1174 = vmatpush1.msra.mxu0 0.0
        %1175 = vmatprep.subr.mxu0 0.0
        %1176 = vmatpush1.msra.mxu0 0.0
        %1177 = vmatprep.subr.mxu0 0.0
        %1178 = vmatpush1.msra.mxu0 0.0
        %1179 = vmatprep.subr.mxu0 0.0
        %1180 = vmatpush1.msra.mxu0 0.0
        %1181 = vmatprep.subr.mxu0 0.0
        %1182 = vmatpush1.msra.mxu0 0.0
        %1183 = vmatprep.subr.mxu0 0.0
        %1184 = vmatpush1.msra.mxu0 0.0
        %1185 = vmatprep.subr.mxu0 0.0
        %1186 = vmatpush1.msra.mxu0 0.0
        %1187 = vmatprep.subr.mxu0 0.0
        %1188 = vmatpush1.msra.mxu0 0.0
        %1189 = vmatprep.subr.mxu0 0.0
        %1190 = vmatpush1.msra.mxu0 0.0
        %1191 = vmatprep.subr.mxu0 0.0
        %1192 = vmatpush1.msra.mxu0 0.0
        %1193 = vmatprep.subr.mxu0 0.0
        %1194 = vmatpush1.msra.mxu0 0.0
        %1195 = vmatprep.subr.mxu0 0.0
        %1196 = vmatpush1.msra.mxu0 0.0
        %1197 = vmatprep.subr.mxu0 0.0
        %1198 = vmatpush1.msra.mxu0 0.0
        %1199 = vmatprep.subr.mxu0 0.0
        %1200 = vmatpush1.msra.mxu0 0.0
        %1201 = vmatprep.subr.mxu0 0.0
        %1202 = vmatpush1.msra.mxu0 0.0
        %1203 = vmatprep.subr.mxu0 0.0
        %1204 = vmatpush1.msra.mxu0 0.0
        %1205 = vmatprep.subr.mxu0 0.0
        %1206 = vmatpush1.msra.mxu0 0.0
        %1207 = vmatprep.mubr.f32.mxu0 0.0
        %1208 = vmatmul.mubr.f32.gmra.mrb[0].mxu0 %v1060
        %v1209 = vpop.f32.mrb[0].mxu0
        %v1210 = vadd.f32 0.0, %v1209
        %v1211 = vpop.f32.mrb[0].mxu0
        %v1212 = vadd.f32 0.0, %v1211
        %1213 = vdwg.mxu0
        %1214 = vmatprep.subr.mxu0 0.0
        %1215 = vmatpush1.msra.mxu0 %v1070
        %1216 = vmatprep.subr.mxu0 0.0
        %1217 = vmatpush1.msra.mxu0 0.0
        %1218 = vmatprep.subr.mxu0 0.0
        %1219 = vmatpush1.msra.mxu0 0.0
        %1220 = vmatprep.subr.mxu0 0.0
        %1221 = vmatpush1.msra.mxu0 0.0
        %1222 = vmatprep.subr.mxu0 0.0
        %1223 = vmatpush1.msra.mxu0 0.0
        %1224 = vmatprep.subr.mxu0 0.0
        %1225 = vmatpush1.msra.mxu0 0.0
        %1226 = vmatprep.subr.mxu0 0.0
        %1227 = vmatpush1.msra.mxu0 0.0
        %1228 = vmatprep.subr.mxu0 0.0
        %1229 = vmatpush1.msra.mxu0 0.0
        %1230 = vmatprep.subr.mxu0 0.0
        %1231 = vmatpush1.msra.mxu0 0.0
        %1232 = vmatprep.subr.mxu0 0.0
        %1233 = vmatpush1.msra.mxu0 0.0
        %1234 = vmatprep.subr.mxu0 0.0
        %1235 = vmatpush1.msra.mxu0 0.0
        %1236 = vmatprep.subr.mxu0 0.0
        %1237 = vmatpush1.msra.mxu0 0.0
        %1238 = vmatprep.subr.mxu0 0.0
        %1239 = vmatpush1.msra.mxu0 0.0
        %1240 = vmatprep.subr.mxu0 0.0
        %1241 = vmatpush1.msra.mxu0 0.0
        %1242 = vmatprep.subr.mxu0 0.0
        %1243 = vmatpush1.msra.mxu0 0.0
        %1244 = vmatprep.subr.mxu0 0.0
        %1245 = vmatpush1.msra.mxu0 0.0
        %1246 = vmatprep.subr.mxu0 0.0
        %1247 = vmatpush1.msra.mxu0 0.0
        %1248 = vmatprep.subr.mxu0 0.0
        %1249 = vmatpush1.msra.mxu0 0.0
        %1250 = vmatprep.subr.mxu0 0.0
        %1251 = vmatpush1.msra.mxu0 0.0
        %1252 = vmatprep.subr.mxu0 0.0
        %1253 = vmatpush1.msra.mxu0 0.0
        %1254 = vmatprep.subr.mxu0 0.0
        %1255 = vmatpush1.msra.mxu0 0.0
        %1256 = vmatprep.subr.mxu0 0.0
        %1257 = vmatpush1.msra.mxu0 0.0
        %1258 = vmatprep.subr.mxu0 0.0
        %1259 = vmatpush1.msra.mxu0 0.0
        %1260 = vmatprep.subr.mxu0 0.0
        %1261 = vmatpush1.msra.mxu0 0.0
        %1262 = vmatprep.subr.mxu0 0.0
        %1263 = vmatpush1.msra.mxu0 0.0
        %1264 = vmatprep.subr.mxu0 0.0
        %1265 = vmatpush1.msra.mxu0 0.0
        %1266 = vmatprep.subr.mxu0 0.0
        %1267 = vmatpush1.msra.mxu0 0.0
        %1268 = vmatprep.subr.mxu0 0.0
        %1269 = vmatpush1.msra.mxu0 0.0
        %1270 = vmatprep.subr.mxu0 0.0
        %1271 = vmatpush1.msra.mxu0 0.0
        %1272 = vmatprep.subr.mxu0 0.0
        %1273 = vmatpush1.msra.mxu0 0.0
        %1274 = vmatprep.subr.mxu0 0.0
        %1275 = vmatpush1.msra.mxu0 0.0
        %1276 = vmatprep.subr.mxu0 0.0
        %1277 = vmatpush1.msra.mxu0 0.0
        %1278 = vmatprep.mubr.f32.mxu0 0.0
        %1279 = vmatmul.mubr.f32.gmra.mrb[0].mxu0 %v1060
        %v1280 = vpop.f32.mrb[0].mxu0
        %v1281 = vadd.f32 0.0, %v1280
        %v1282 = vpop.f32.mrb[0].mxu0
        %1283 = vdwg.mxu0
        %v1284 = vsel %vm372, %v1139, 0.0
        %v1285 = vsel %vm372, %v1141, 0.0
        %v1286 = vadd.f32 %v1284, %v1285
        %v1287 = vsel %vm372, %v1210, 0.0
        %v1288 = vadd.f32 %v1286, %v1287
        %v1289 = vsel %vm372, %v1212, 0.0
        %v1290 = vadd.f32 %v1288, %v1289
        %vm1291 = vcmask 519168
        %v1292 = vsel %vm1291, %v1281, 0.0
        %v1293 = vadd.f32 %v1290, %v1292
        %1294 = vadd.xlane.f32.xlu0 %v1293
        %v1295 = vpop.xlane.xlu0 %1294
        %v1296 = vmul.f32 %v1295, 0.00390625
        %v1297 = vld [vmem:[%s4] sm:$0xf]
        %v1298 = vadd.f32 %v1296, %v1297
        %v1299 = vmax.f32 %v1298, 0.0
        %1301 = vset.pattern.permute.xlu0 0
        %1302 = vperm.xlu0 %1301, %v1299
        %v1303 = vpop.permute.xlu0 %1302
        %v1304 = vrot.slane %v1303, 4
        %1306 = vst [vmem:[%s267 + $0x10] sm:$0xf0] %v1304
        %1307 = vst [vmem:[%s267 + $0x18] sm:$0xf0] %v1304
        %s1308 = sand.u32 %s162, 1
        %s1309 = scalar_lea.sflag [#allocation5], %s1308
        %s1310 = sand.u32 %s162, 1
        %s1311 = smul.addr %s1310, 32
        %s1312 = scalar_lea.vmem [#allocation6], %s1311
        // Predicated region
        $region49: #{tpu_custom_call.1} parent=43 // pred_check
          %p1313 = pneg %p172
        $region50: #{tpu_custom_call.1} parent=43 // pred_check_branch
          %1315 = sbr.rel (%p1313) target = $region52
        $region51: #{tpu_custom_call.1} parent=43 // pred_region
          %s1317 = ssub.s32 512, 512
          %1318 = vsyncadd %s1309, %s1317
          %s1319 = smul.addr %s23, 4
          %s1320 = smul.addr %s1319, 128
          %s1321 = scalar_lea.hbm %s6, %s1320
          %s1322 = sshll.u32 %s1312, 4
          %s1323 = int_to_ptr.vmem [resolvable:$true] %s1322
          %1328 = dma.vmem_to_hbm [thread:$0]  %s1323, 512, %s1321, %s1309, 256, 256, 16
        $region52: #{tpu_custom_call.1} parent=43 // pred_fallthru
          _
      $region44: #{tpu_custom_call.1} parent=5 // pred_fallthru
        _
      %p1329 = scmp.le.s32.totalorder 2, %s18
      // Predicated region
      $region53: #{tpu_custom_call.1} parent=5 // pred_check
        %p1330 = pneg %p1329
      $region54: #{tpu_custom_call.1} parent=5 // pred_check_branch
        %1332 = sbr.rel (%p1330) target = $region56
      $region55: #{tpu_custom_call.1} parent=5 // pred_region
        %s1333 = ssub.s32 %s18, 2
        // Predicated region
        $region57: #{tpu_custom_call.1} parent=55 // pred_check
          %p1334 = pneg %p178
        $region58: #{tpu_custom_call.1} parent=55 // pred_check_branch
          %1336 = sbr.rel (%p1334) target = $region60
        $region59: #{tpu_custom_call.1} parent=55 // pred_region
          %s1337 = sand.u32 %s163, 1
          %s1338 = scalar_lea.sflag [#allocation5], %s1337
          %s1339 = sand.u32 %s163, 1
          %s1340 = smul.addr %s1339, 32
          %s1341 = scalar_lea.vmem [#allocation6], %s1340
          %1342 = dma.done %s1338, 512
        $region60: #{tpu_custom_call.1} parent=55 // pred_fallthru
          _
      $region56: #{tpu_custom_call.1} parent=5 // pred_fallthru
        _
    $region6: #{tpu_custom_call.1} parent=1 // loop_footer
      %s22 = sadd.s32 1, %s18
    $region7: #{tpu_custom_call.1} parent=1 // loop_footer_branch
      %17 = sbr.rel target = $region3
    $region8: #{tpu_custom_call.1} parent=1 // loop_exit
      _
    %1343 = vsyncpa [#allocation4], 1
    %s1344 = scalar_lea.sflag [#allocation4], 1
    %1345 = vsyncpa %s1344, 1
    %1346 = vsyncpa [#allocation5], 1
    %s1347 = scalar_lea.sflag [#allocation5], 1
    %1348 = vsyncpa %s1347, 1

</llo_original>
